<compile_context>
chip_gen: v7x
topology: tpu7x:2x2x1
jax: 0.10.0
libtpu: 0.0.40
codegen_flags: <defaults>
</compile_context>

<pallas_src>
import functools

import jax
import jax.numpy as jnp
from jax.experimental import pallas as pl
from jax.experimental.pallas import tpu as pltpu  # noqa: F401  (memory spaces / params if needed)

_SUBLANE = 8    # f32 sublane tile
_LANE = 128     # lane tile


def _round_up(n, m):
    return (n + m - 1) // m * m


# -----------------------------------------------------------------------------
# Kernel
# -----------------------------------------------------------------------------
# Kernel-internal gate order along the 4H axis is [i, f, o, g] (sigmoid gates
# contiguous, tanh gate last); the wrapper permutes the PyTorch [i, f, g, o]
# weight/bias columns to match (one-time prep).

def _sigmoid_via_tanh(x):
    # sigmoid(x) == 0.5 * (1 + tanh(x/2)); one EUP pass instead of exp + divide.
    return 0.5 * (jnp.tanh(0.5 * x) + 1.0)


def _gates_to_state(gates, c_prev, H):
    ifo = _sigmoid_via_tanh(gates[:, :3 * H])   # one lane-dense EUP pass over 3H lanes
    g = jnp.tanh(gates[:, 3 * H:4 * H])
    i = ifo[:, 0 * H:1 * H]
    f = ifo[:, 1 * H:2 * H]
    o = ifo[:, 2 * H:3 * H]
    c_new = f * c_prev + i * g
    h_new = o * jnp.tanh(c_new)
    return h_new, c_new


def name_classifier_kernel(x_ref,       # (T*Bp, I)   time-major, batch padded to Bp
                           wih0_ref,    # (I, 4H)
                           whh0_ref,    # (H, 4H)
                           b0_ref,      # (1, 4H)     b_ih + b_hh, layer 0
                           wih1_ref,    # (H, 4H)
                           whh1_ref,    # (H, 4H)
                           b1_ref,      # (1, 4H)     b_ih + b_hh, layer 1
                           wfc_ref,     # (H, Op)     Op = O padded to 128 lanes
                           bfc_ref,     # (1, Op)
                           out_ref,     # (Bp, Op)
                           *, T, Bp):
    H = whh0_ref.shape[0]
    G = 4 * H

    whh0 = whh0_ref[...]
    wih1 = wih1_ref[...]
    whh1 = whh1_ref[...]
    # Hoist bias broadcast out of the unrolled loop (JAX does not CSE broadcast_in_dim).
    b1b = jnp.broadcast_to(b1_ref[...], (Bp, G))

    # --- Hoisted layer-0 input projection: all T*Bp rows in one MXU matmul, bias folded. ---
    # Time-major: reshape (T*Bp, G) -> (T, Bp, G) is layout-preserving (Bp multiple of 8,
    # lane dim unchanged), and xg[t] below is a whole aligned (Bp, 4H) tile per step.
    xg = (jnp.dot(x_ref[...], wih0_ref[...], preferred_element_type=jnp.float32)
          + b0_ref[...]).reshape(T, Bp, G)

    z = jnp.zeros((Bp, H), jnp.float32)          # h0 = c0 = 0, as in the module forward
    h1, c1, h2, c2 = z, z, z, z

    # T is a small compile-time constant: full static unroll (static slices, full
    # scheduler visibility across timesteps).
    for t in range(T):
        # Layer 0: only the recurrent matmul remains on the serial chain.
        g0 = xg[t] + jnp.dot(h1, whh0, preferred_element_type=jnp.float32)
        h1, c1 = _gates_to_state(g0, c1, H)
        # Layer 1: two independent dots (no per-step lane concat of [h1, h2]);
        # the add between accumulators is free relative to a vreg lane shuffle.
        g1 = (jnp.dot(h1, wih1, preferred_element_type=jnp.float32)
              + jnp.dot(h2, whh1, preferred_element_type=jnp.float32)
              + b1b)
        h2, c2 = _gates_to_state(g1, c2, H)

    # fc(out[:, -1, :]) : last-timestep hidden of top layer -> linear head.
    # Output slab is lane-dense (Op multiple of 128) -> unmasked stores.
    out_ref[...] = (jnp.dot(h2, wfc_ref[...], preferred_element_type=jnp.float32)
                    + bfc_ref[...])


# -----------------------------------------------------------------------------
# One-time weight preparation (hoisted out of the per-call forward)
# -----------------------------------------------------------------------------

def _reorder_gate_cols(w):
    """PyTorch gate order [i, f, g, o] along the 4H axis -> kernel order [i, f, o, g]."""
    H = w.shape[-1] // 4
    return jnp.concatenate([w[..., 0:2 * H], w[..., 3 * H:4 * H], w[..., 2 * H:3 * H]],
                           axis=-1)


def prepare_kernel_params(params):
    """Gate reorder, fc lane padding, dtype pinning. Call ONCE; the per-call forward
    then does zero wrapper-side weight work (these would otherwise be separate XLA ops
    + HBM writes on every ~1-2 us inference call)."""
    H = params["whh0"].shape[0]
    O = params["wfc"].shape[1]
    Op = _round_up(max(O, 1), _LANE)
    kp = {
        "wih0": _reorder_gate_cols(params["wih0"]).astype(jnp.float32),
        "whh0": _reorder_gate_cols(params["whh0"]).astype(jnp.float32),
        "b0":   _reorder_gate_cols(params["b0"]).astype(jnp.float32),
        "wih1": _reorder_gate_cols(params["wih1"]).astype(jnp.float32),
        "whh1": _reorder_gate_cols(params["whh1"]).astype(jnp.float32),
        "b1":   _reorder_gate_cols(params["b1"]).astype(jnp.float32),
        "wfc":  jnp.zeros((H, Op), jnp.float32).at[:, :O].set(params["wfc"]),
        "bfc":  jnp.zeros((1, Op), jnp.float32).at[:, :O].set(params["bfc"]),
    }
    return jax.tree_util.tree_map(jnp.asarray, kp)


# -----------------------------------------------------------------------------
# Forward wrapper (per-call work: pad/transpose x only, then pallas_call)
# -----------------------------------------------------------------------------

@functools.partial(jax.jit, static_argnames=("output_size",))
def name_classifier_forward(x_btI, kparams, output_size):
    """x_btI: (B, T, input_size) float32; kparams from prepare_kernel_params()."""
    B, T, I = x_btI.shape
    Op = kparams["wfc"].shape[1]
    Bp = _round_up(max(B, 1), _SUBLANE)   # pad batch (sublane) dim to a multiple of 8

    # Time-major, batch-padded input, flattened to (T*Bp, I). The tiny transpose fuses
    # with the zero-pad under jit; it makes every per-step gate slice inside the kernel
    # a whole aligned tile.
    x_tm = jnp.transpose(x_btI.astype(jnp.float32), (1, 0, 2))            # (T, B, I)
    x_pad = (jnp.zeros((T, Bp, I), jnp.float32)
             .at[:, :B, :].set(x_tm)
             .reshape(T * Bp, I))

    operands = (x_pad,
                kparams["wih0"], kparams["whh0"], kparams["b0"],
                kparams["wih1"], kparams["whh1"], kparams["b1"],
                kparams["wfc"], kparams["bfc"])
    full_spec = lambda a: pl.BlockSpec(a.shape, lambda: (0,) * a.ndim)

    fn = pl.pallas_call(
        functools.partial(name_classifier_kernel, T=T, Bp=Bp),
        out_shape=jax.ShapeDtypeStruct((Bp, Op), jnp.float32),
        in_specs=[full_spec(a) for a in operands],
        out_specs=pl.BlockSpec((Bp, Op), lambda: (0, 0)),
        # Footprint is a few tens of KiB; default scoped-VMEM limit is ample on v5e/v6e/v7x.
        # For large production batches, add a grid over batch rows with
        # dimension_semantics=("parallel",) so v7x's second TensorCore is used.
    )
    out = fn(*operands)
    return out[:B, :output_size]


# -----------------------------------------------------------------------------
# Params + pure-JAX reference (PyTorch semantics, standard i,f,g,o gate order)
# -----------------------------------------------------------------------------

def init_params(key, input_size, hidden_size, output_size):
    """Deterministic init; shapes match nn.LSTM(num_layers=2) + nn.Linear (pre-transposed)."""
    H = hidden_size
    k = 1.0 / jnp.sqrt(jnp.float32(H))
    keys = jax.random.split(key, 10)
    u = lambda kk, shape: jax.random.uniform(kk, shape, jnp.float32, -k, k)

    wih0 = u(keys[0], (4 * H, input_size)).T
    whh0 = u(keys[1], (4 * H, H)).T
    b0 = (u(keys[2], (4 * H,)) + u(keys[3], (4 * H,)))[None, :]   # b_ih + b_hh
    wih1 = u(keys[4], (4 * H, H)).T
    whh1 = u(keys[5], (4 * H, H)).T
    b1 = (u(keys[6], (4 * H,)) + u(keys[7], (4 * H,)))[None, :]
    wfc = u(keys[8], (output_size, H)).T
    bfc = u(keys[9], (output_size,))[None, :]
    return dict(wih0=wih0, whh0=whh0, b0=b0,
                wih1=wih1, whh1=whh1, b1=b1,
                wfc=wfc, bfc=bfc)


def _lstm_cell_ref(x_t, h, c, w_ih, w_hh, b, H):
    gates = jnp.dot(x_t, w_ih) + jnp.dot(h, w_hh) + b
    i = jax.nn.sigmoid(gates[:, 0 * H:1 * H])
    f = jax.nn.sigmoid(gates[:, 1 * H:2 * H])
    g = jnp.tanh(gates[:, 2 * H:3 * H])
    o = jax.nn.sigmoid(gates[:, 3 * H:4 * H])
    c_new = f * c + i * g
    return o * jnp.tanh(c_new), c_new


def reference_forward(x_btI, params):
    B, T, _ = x_btI.shape
    H = params["whh0"].shape[0]
    h1 = c1 = h2 = c2 = jnp.zeros((B, H), jnp.float32)
    for t in range(T):
        x_t = x_btI[:, t, :]
        h1, c1 = _lstm_cell_ref(x_t, h1, c1, params["wih0"], params["whh0"], params["b0"], H)
        h2, c2 = _lstm_cell_ref(h1, h2, c2, params["wih1"], params["whh1"], params["b1"], H)
    return jnp.dot(h2, params["wfc"]) + params["bfc"]


if __name__ == "__main__":
    B, T, INPUT, HIDDEN, OUTPUT = 2, 8, 16, 32, 4

    key = jax.random.PRNGKey(0)
    kx, kp = jax.random.split(key)
    x = jax.random.normal(kx, (B, T, INPUT), jnp.float32)
    params = init_params(kp, INPUT, HIDDEN, OUTPUT)

    kparams = prepare_kernel_params(params)          # one-time weight prep (hoisted)

    out = name_classifier_forward(x, kparams, OUTPUT)
    out = jax.block_until_ready(out)

    ref = reference_forward(x, params)
    assert out.shape == (B, OUTPUT)
    assert jnp.allclose(out, ref, atol=1e-4, rtol=1e-4)

    print("KERNEL_OK")
</pallas_src>

<mosaic_0001>
module attributes {stable_mosaic.version = 11 : i64} {
  func.func @name_classifier_kernel(%arg0: memref<64x16xf32, #tpu.memory_space<vmem>>, %arg1: memref<16x128xf32, #tpu.memory_space<vmem>>, %arg2: memref<32x128xf32, #tpu.memory_space<vmem>>, %arg3: memref<1x128xf32, #tpu.memory_space<vmem>>, %arg4: memref<32x128xf32, #tpu.memory_space<vmem>>, %arg5: memref<32x128xf32, #tpu.memory_space<vmem>>, %arg6: memref<1x128xf32, #tpu.memory_space<vmem>>, %arg7: memref<32x128xf32, #tpu.memory_space<vmem>>, %arg8: memref<1x128xf32, #tpu.memory_space<vmem>>, %arg9: memref<8x128xf32, #tpu.memory_space<vmem>>) attributes {dimension_semantics = [], scalar_prefetch = 0 : i64, scratch_operands = 0 : i64, tpu.core_type = #tpu.core_type<tc>} {
    %c0 = arith.constant 0 : index
    %c0_0 = arith.constant 0 : index
    %0 = vector.load %arg2[%c0, %c0_0] : memref<32x128xf32, #tpu.memory_space<vmem>>, vector<32x128xf32>
    %c0_1 = arith.constant 0 : index
    %c0_2 = arith.constant 0 : index
    %1 = vector.load %arg4[%c0_1, %c0_2] : memref<32x128xf32, #tpu.memory_space<vmem>>, vector<32x128xf32>
    %c0_3 = arith.constant 0 : index
    %c0_4 = arith.constant 0 : index
    %2 = vector.load %arg5[%c0_3, %c0_4] : memref<32x128xf32, #tpu.memory_space<vmem>>, vector<32x128xf32>
    %c0_5 = arith.constant 0 : index
    %c0_6 = arith.constant 0 : index
    %3 = vector.load %arg6[%c0_5, %c0_6] : memref<1x128xf32, #tpu.memory_space<vmem>>, vector<1x128xf32>
    %4 = vector.shape_cast %3 : vector<1x128xf32> to vector<1x128xf32>
    %5 = vector.broadcast %4 : vector<1x128xf32> to vector<8x128xf32>
    %c0_7 = arith.constant 0 : index
    %c0_8 = arith.constant 0 : index
    %6 = vector.load %arg0[%c0_7, %c0_8] : memref<64x16xf32, #tpu.memory_space<vmem>>, vector<64x16xf32>
    %c0_9 = arith.constant 0 : index
    %c0_10 = arith.constant 0 : index
    %7 = vector.load %arg1[%c0_9, %c0_10] : memref<16x128xf32, #tpu.memory_space<vmem>>, vector<16x128xf32>
    %cst = arith.constant dense<0.000000e+00> : vector<64x128xf32>
    %8 = tpu.matmul %6, %7, %cst {dimension_numbers = #tpu.dot_dimension_numbers<[1], [0], [0], [1], [0, 0, 1, 1], [], []>} : vector<64x16xf32>, vector<16x128xf32>, vector<64x128xf32> -> vector<64x128xf32>
    %c0_11 = arith.constant 0 : index
    %c0_12 = arith.constant 0 : index
    %9 = vector.load %arg3[%c0_11, %c0_12] : memref<1x128xf32, #tpu.memory_space<vmem>>, vector<1x128xf32>
    %10 = vector.broadcast %9 : vector<1x128xf32> to vector<64x128xf32>
    %11 = arith.addf %8, %10 : vector<64x128xf32>
    %12 = vector.shape_cast %11 : vector<64x128xf32> to vector<8x8x128xf32>
    %cst_13 = arith.constant 0.000000e+00 : f32
    %13 = vector.broadcast %cst_13 : f32 to vector<8x32xf32>
    %14 = vector.extract_strided_slice %12 {offsets = [0, 0, 0], sizes = [1, 8, 128], strides = [1, 1, 1]} : vector<8x8x128xf32> to vector<1x8x128xf32>
    %15 = vector.shape_cast %14 : vector<1x8x128xf32> to vector<8x128xf32>
    %cst_14 = arith.constant dense<0.000000e+00> : vector<8x128xf32>
    %16 = tpu.matmul %13, %0, %cst_14 {dimension_numbers = #tpu.dot_dimension_numbers<[1], [0], [0], [1], [0, 0, 1, 1], [], []>} : vector<8x32xf32>, vector<32x128xf32>, vector<8x128xf32> -> vector<8x128xf32>
    %17 = arith.addf %15, %16 : vector<8x128xf32>
    %18 = vector.extract_strided_slice %17 {offsets = [0, 0], sizes = [8, 96], strides = [1, 1]} : vector<8x128xf32> to vector<8x96xf32>
    %cst_15 = arith.constant 5.000000e-01 : f32
    %19 = vector.broadcast %cst_15 : f32 to vector<8x96xf32>
    %20 = arith.mulf %19, %18 : vector<8x96xf32>
    %21 = math.tanh %20 : vector<8x96xf32>
    %cst_16 = arith.constant 1.000000e+00 : f32
    %22 = vector.broadcast %cst_16 : f32 to vector<8x96xf32>
    %23 = arith.addf %21, %22 : vector<8x96xf32>
    %cst_17 = arith.constant 5.000000e-01 : f32
    %24 = vector.broadcast %cst_17 : f32 to vector<8x96xf32>
    %25 = arith.mulf %24, %23 : vector<8x96xf32>
    %26 = vector.extract_strided_slice %17 {offsets = [0, 96], sizes = [8, 32], strides = [1, 1]} : vector<8x128xf32> to vector<8x32xf32>
    %27 = math.tanh %26 : vector<8x32xf32>
    %28 = vector.extract_strided_slice %25 {offsets = [0, 0], sizes = [8, 32], strides = [1, 1]} : vector<8x96xf32> to vector<8x32xf32>
    %29 = vector.extract_strided_slice %25 {offsets = [0, 32], sizes = [8, 32], strides = [1, 1]} : vector<8x96xf32> to vector<8x32xf32>
    %30 = vector.extract_strided_slice %25 {offsets = [0, 64], sizes = [8, 32], strides = [1, 1]} : vector<8x96xf32> to vector<8x32xf32>
    %31 = arith.mulf %29, %13 : vector<8x32xf32>
    %32 = arith.mulf %28, %27 : vector<8x32xf32>
    %33 = arith.addf %31, %32 : vector<8x32xf32>
    %34 = math.tanh %33 : vector<8x32xf32>
    %35 = arith.mulf %30, %34 : vector<8x32xf32>
    %cst_18 = arith.constant dense<0.000000e+00> : vector<8x128xf32>
    %36 = tpu.matmul %35, %1, %cst_18 {dimension_numbers = #tpu.dot_dimension_numbers<[1], [0], [0], [1], [0, 0, 1, 1], [], []>} : vector<8x32xf32>, vector<32x128xf32>, vector<8x128xf32> -> vector<8x128xf32>
    %cst_19 = arith.constant dense<0.000000e+00> : vector<8x128xf32>
    %37 = tpu.matmul %13, %2, %cst_19 {dimension_numbers = #tpu.dot_dimension_numbers<[1], [0], [0], [1], [0, 0, 1, 1], [], []>} : vector<8x32xf32>, vector<32x128xf32>, vector<8x128xf32> -> vector<8x128xf32>
    %38 = arith.addf %36, %37 : vector<8x128xf32>
    %39 = arith.addf %38, %5 : vector<8x128xf32>
    %40 = vector.extract_strided_slice %39 {offsets = [0, 0], sizes = [8, 96], strides = [1, 1]} : vector<8x128xf32> to vector<8x96xf32>
    %cst_20 = arith.constant 5.000000e-01 : f32
    %41 = vector.broadcast %cst_20 : f32 to vector<8x96xf32>
    %42 = arith.mulf %41, %40 : vector<8x96xf32>
    %43 = math.tanh %42 : vector<8x96xf32>
    %cst_21 = arith.constant 1.000000e+00 : f32
    %44 = vector.broadcast %cst_21 : f32 to vector<8x96xf32>
    %45 = arith.addf %43, %44 : vector<8x96xf32>
    %cst_22 = arith.constant 5.000000e-01 : f32
    %46 = vector.broadcast %cst_22 : f32 to vector<8x96xf32>
    %47 = arith.mulf %46, %45 : vector<8x96xf32>
    %48 = vector.extract_strided_slice %39 {offsets = [0, 96], sizes = [8, 32], strides = [1, 1]} : vector<8x128xf32> to vector<8x32xf32>
    %49 = math.tanh %48 : vector<8x32xf32>
    %50 = vector.extract_strided_slice %47 {offsets = [0, 0], sizes = [8, 32], strides = [1, 1]} : vector<8x96xf32> to vector<8x32xf32>
    %51 = vector.extract_strided_slice %47 {offsets = [0, 32], sizes = [8, 32], strides = [1, 1]} : vector<8x96xf32> to vector<8x32xf32>
    %52 = vector.extract_strided_slice %47 {offsets = [0, 64], sizes = [8, 32], strides = [1, 1]} : vector<8x96xf32> to vector<8x32xf32>
    %53 = arith.mulf %51, %13 : vector<8x32xf32>
    %54 = arith.mulf %50, %49 : vector<8x32xf32>
    %55 = arith.addf %53, %54 : vector<8x32xf32>
    %56 = math.tanh %55 : vector<8x32xf32>
    %57 = arith.mulf %52, %56 : vector<8x32xf32>
    %58 = vector.extract_strided_slice %12 {offsets = [1, 0, 0], sizes = [1, 8, 128], strides = [1, 1, 1]} : vector<8x8x128xf32> to vector<1x8x128xf32>
    %59 = vector.shape_cast %58 : vector<1x8x128xf32> to vector<8x128xf32>
    %cst_23 = arith.constant dense<0.000000e+00> : vector<8x128xf32>
    %60 = tpu.matmul %35, %0, %cst_23 {dimension_numbers = #tpu.dot_dimension_numbers<[1], [0], [0], [1], [0, 0, 1, 1], [], []>} : vector<8x32xf32>, vector<32x128xf32>, vector<8x128xf32> -> vector<8x128xf32>
    %61 = arith.addf %59, %60 : vector<8x128xf32>
    %62 = vector.extract_strided_slice %61 {offsets = [0, 0], sizes = [8, 96], strides = [1, 1]} : vector<8x128xf32> to vector<8x96xf32>
    %cst_24 = arith.constant 5.000000e-01 : f32
    %63 = vector.broadcast %cst_24 : f32 to vector<8x96xf32>
    %64 = arith.mulf %63, %62 : vector<8x96xf32>
    %65 = math.tanh %64 : vector<8x96xf32>
    %cst_25 = arith.constant 1.000000e+00 : f32
    %66 = vector.broadcast %cst_25 : f32 to vector<8x96xf32>
    %67 = arith.addf %65, %66 : vector<8x96xf32>
    %cst_26 = arith.constant 5.000000e-01 : f32
    %68 = vector.broadcast %cst_26 : f32 to vector<8x96xf32>
    %69 = arith.mulf %68, %67 : vector<8x96xf32>
    %70 = vector.extract_strided_slice %61 {offsets = [0, 96], sizes = [8, 32], strides = [1, 1]} : vector<8x128xf32> to vector<8x32xf32>
    %71 = math.tanh %70 : vector<8x32xf32>
    %72 = vector.extract_strided_slice %69 {offsets = [0, 0], sizes = [8, 32], strides = [1, 1]} : vector<8x96xf32> to vector<8x32xf32>
    %73 = vector.extract_strided_slice %69 {offsets = [0, 32], sizes = [8, 32], strides = [1, 1]} : vector<8x96xf32> to vector<8x32xf32>
    %74 = vector.extract_strided_slice %69 {offsets = [0, 64], sizes = [8, 32], strides = [1, 1]} : vector<8x96xf32> to vector<8x32xf32>
    %75 = arith.mulf %73, %33 : vector<8x32xf32>
    %76 = arith.mulf %72, %71 : vector<8x32xf32>
    %77 = arith.addf %75, %76 : vector<8x32xf32>
    %78 = math.tanh %77 : vector<8x32xf32>
    %79 = arith.mulf %74, %78 : vector<8x32xf32>
    %cst_27 = arith.constant dense<0.000000e+00> : vector<8x128xf32>
    %80 = tpu.matmul %79, %1, %cst_27 {dimension_numbers = #tpu.dot_dimension_numbers<[1], [0], [0], [1], [0, 0, 1, 1], [], []>} : vector<8x32xf32>, vector<32x128xf32>, vector<8x128xf32> -> vector<8x128xf32>
    %cst_28 = arith.constant dense<0.000000e+00> : vector<8x128xf32>
    %81 = tpu.matmul %57, %2, %cst_28 {dimension_numbers = #tpu.dot_dimension_numbers<[1], [0], [0], [1], [0, 0, 1, 1], [], []>} : vector<8x32xf32>, vector<32x128xf32>, vector<8x128xf32> -> vector<8x128xf32>
    %82 = arith.addf %80, %81 : vector<8x128xf32>
    %83 = arith.addf %82, %5 : vector<8x128xf32>
    %84 = vector.extract_strided_slice %83 {offsets = [0, 0], sizes = [8, 96], strides = [1, 1]} : vector<8x128xf32> to vector<8x96xf32>
    %cst_29 = arith.constant 5.000000e-01 : f32
    %85 = vector.broadcast %cst_29 : f32 to vector<8x96xf32>
    %86 = arith.mulf %85, %84 : vector<8x96xf32>
    %87 = math.tanh %86 : vector<8x96xf32>
    %cst_30 = arith.constant 1.000000e+00 : f32
    %88 = vector.broadcast %cst_30 : f32 to vector<8x96xf32>
    %89 = arith.addf %87, %88 : vector<8x96xf32>
    %cst_31 = arith.constant 5.000000e-01 : f32
    %90 = vector.broadcast %cst_31 : f32 to vector<8x96xf32>
    %91 = arith.mulf %90, %89 : vector<8x96xf32>
    %92 = vector.extract_strided_slice %83 {offsets = [0, 96], sizes = [8, 32], strides = [1, 1]} : vector<8x128xf32> to vector<8x32xf32>
    %93 = math.tanh %92 : vector<8x32xf32>
    %94 = vector.extract_strided_slice %91 {offsets = [0, 0], sizes = [8, 32], strides = [1, 1]} : vector<8x96xf32> to vector<8x32xf32>
    %95 = vector.extract_strided_slice %91 {offsets = [0, 32], sizes = [8, 32], strides = [1, 1]} : vector<8x96xf32> to vector<8x32xf32>
    %96 = vector.extract_strided_slice %91 {offsets = [0, 64], sizes = [8, 32], strides = [1, 1]} : vector<8x96xf32> to vector<8x32xf32>
    %97 = arith.mulf %95, %55 : vector<8x32xf32>
    %98 = arith.mulf %94, %93 : vector<8x32xf32>
    %99 = arith.addf %97, %98 : vector<8x32xf32>
    %100 = math.tanh %99 : vector<8x32xf32>
    %101 = arith.mulf %96, %100 : vector<8x32xf32>
    %102 = vector.extract_strided_slice %12 {offsets = [2, 0, 0], sizes = [1, 8, 128], strides = [1, 1, 1]} : vector<8x8x128xf32> to vector<1x8x128xf32>
    %103 = vector.shape_cast %102 : vector<1x8x128xf32> to vector<8x128xf32>
    %cst_32 = arith.constant dense<0.000000e+00> : vector<8x128xf32>
    %104 = tpu.matmul %79, %0, %cst_32 {dimension_numbers = #tpu.dot_dimension_numbers<[1], [0], [0], [1], [0, 0, 1, 1], [], []>} : vector<8x32xf32>, vector<32x128xf32>, vector<8x128xf32> -> vector<8x128xf32>
    %105 = arith.addf %103, %104 : vector<8x128xf32>
    %106 = vector.extract_strided_slice %105 {offsets = [0, 0], sizes = [8, 96], strides = [1, 1]} : vector<8x128xf32> to vector<8x96xf32>
    %cst_33 = arith.constant 5.000000e-01 : f32
    %107 = vector.broadcast %cst_33 : f32 to vector<8x96xf32>
    %108 = arith.mulf %107, %106 : vector<8x96xf32>
    %109 = math.tanh %108 : vector<8x96xf32>
    %cst_34 = arith.constant 1.000000e+00 : f32
    %110 = vector.broadcast %cst_34 : f32 to vector<8x96xf32>
    %111 = arith.addf %109, %110 : vector<8x96xf32>
    %cst_35 = arith.constant 5.000000e-01 : f32
    %112 = vector.broadcast %cst_35 : f32 to vector<8x96xf32>
    %113 = arith.mulf %112, %111 : vector<8x96xf32>
    %114 = vector.extract_strided_slice %105 {offsets = [0, 96], sizes = [8, 32], strides = [1, 1]} : vector<8x128xf32> to vector<8x32xf32>
    %115 = math.tanh %114 : vector<8x32xf32>
    %116 = vector.extract_strided_slice %113 {offsets = [0, 0], sizes = [8, 32], strides = [1, 1]} : vector<8x96xf32> to vector<8x32xf32>
    %117 = vector.extract_strided_slice %113 {offsets = [0, 32], sizes = [8, 32], strides = [1, 1]} : vector<8x96xf32> to vector<8x32xf32>
    %118 = vector.extract_strided_slice %113 {offsets = [0, 64], sizes = [8, 32], strides = [1, 1]} : vector<8x96xf32> to vector<8x32xf32>
    %119 = arith.mulf %117, %77 : vector<8x32xf32>
    %120 = arith.mulf %116, %115 : vector<8x32xf32>
    %121 = arith.addf %119, %120 : vector<8x32xf32>
    %122 = math.tanh %121 : vector<8x32xf32>
    %123 = arith.mulf %118, %122 : vector<8x32xf32>
    %cst_36 = arith.constant dense<0.000000e+00> : vector<8x128xf32>
    %124 = tpu.matmul %123, %1, %cst_36 {dimension_numbers = #tpu.dot_dimension_numbers<[1], [0], [0], [1], [0, 0, 1, 1], [], []>} : vector<8x32xf32>, vector<32x128xf32>, vector<8x128xf32> -> vector<8x128xf32>
    %cst_37 = arith.constant dense<0.000000e+00> : vector<8x128xf32>
    %125 = tpu.matmul %101, %2, %cst_37 {dimension_numbers = #tpu.dot_dimension_numbers<[1], [0], [0], [1], [0, 0, 1, 1], [], []>} : vector<8x32xf32>, vector<32x128xf32>, vector<8x128xf32> -> vector<8x128xf32>
    %126 = arith.addf %124, %125 : vector<8x128xf32>
    %127 = arith.addf %126, %5 : vector<8x128xf32>
    %128 = vector.extract_strided_slice %127 {offsets = [0, 0], sizes = [8, 96], strides = [1, 1]} : vector<8x128xf32> to vector<8x96xf32>
    %cst_38 = arith.constant 5.000000e-01 : f32
    %129 = vector.broadcast %cst_38 : f32 to vector<8x96xf32>
    %130 = arith.mulf %129, %128 : vector<8x96xf32>
    %131 = math.tanh %130 : vector<8x96xf32>
    %cst_39 = arith.constant 1.000000e+00 : f32
    %132 = vector.broadcast %cst_39 : f32 to vector<8x96xf32>
    %133 = arith.addf %131, %132 : vector<8x96xf32>
    %cst_40 = arith.constant 5.000000e-01 : f32
    %134 = vector.broadcast %cst_40 : f32 to vector<8x96xf32>
    %135 = arith.mulf %134, %133 : vector<8x96xf32>
    %136 = vector.extract_strided_slice %127 {offsets = [0, 96], sizes = [8, 32], strides = [1, 1]} : vector<8x128xf32> to vector<8x32xf32>
    %137 = math.tanh %136 : vector<8x32xf32>
    %138 = vector.extract_strided_slice %135 {offsets = [0, 0], sizes = [8, 32], strides = [1, 1]} : vector<8x96xf32> to vector<8x32xf32>
    %139 = vector.extract_strided_slice %135 {offsets = [0, 32], sizes = [8, 32], strides = [1, 1]} : vector<8x96xf32> to vector<8x32xf32>
    %140 = vector.extract_strided_slice %135 {offsets = [0, 64], sizes = [8, 32], strides = [1, 1]} : vector<8x96xf32> to vector<8x32xf32>
    %141 = arith.mulf %139, %99 : vector<8x32xf32>
    %142 = arith.mulf %138, %137 : vector<8x32xf32>
    %143 = arith.addf %141, %142 : vector<8x32xf32>
    %144 = math.tanh %143 : vector<8x32xf32>
    %145 = arith.mulf %140, %144 : vector<8x32xf32>
    %146 = vector.extract_strided_slice %12 {offsets = [3, 0, 0], sizes = [1, 8, 128], strides = [1, 1, 1]} : vector<8x8x128xf32> to vector<1x8x128xf32>
    %147 = vector.shape_cast %146 : vector<1x8x128xf32> to vector<8x128xf32>
    %cst_41 = arith.constant dense<0.000000e+00> : vector<8x128xf32>
    %148 = tpu.matmul %123, %0, %cst_41 {dimension_numbers = #tpu.dot_dimension_numbers<[1], [0], [0], [1], [0, 0, 1, 1], [], []>} : vector<8x32xf32>, vector<32x128xf32>, vector<8x128xf32> -> vector<8x128xf32>
    %149 = arith.addf %147, %148 : vector<8x128xf32>
    %150 = vector.extract_strided_slice %149 {offsets = [0, 0], sizes = [8, 96], strides = [1, 1]} : vector<8x128xf32> to vector<8x96xf32>
    %cst_42 = arith.constant 5.000000e-01 : f32
    %151 = vector.broadcast %cst_42 : f32 to vector<8x96xf32>
    %152 = arith.mulf %151, %150 : vector<8x96xf32>
    %153 = math.tanh %152 : vector<8x96xf32>
    %cst_43 = arith.constant 1.000000e+00 : f32
    %154 = vector.broadcast %cst_43 : f32 to vector<8x96xf32>
    %155 = arith.addf %153, %154 : vector<8x96xf32>
    %cst_44 = arith.constant 5.000000e-01 : f32
    %156 = vector.broadcast %cst_44 : f32 to vector<8x96xf32>
    %157 = arith.mulf %156, %155 : vector<8x96xf32>
    %158 = vector.extract_strided_slice %149 {offsets = [0, 96], sizes = [8, 32], strides = [1, 1]} : vector<8x128xf32> to vector<8x32xf32>
    %159 = math.tanh %158 : vector<8x32xf32>
    %160 = vector.extract_strided_slice %157 {offsets = [0, 0], sizes = [8, 32], strides = [1, 1]} : vector<8x96xf32> to vector<8x32xf32>
    %161 = vector.extract_strided_slice %157 {offsets = [0, 32], sizes = [8, 32], strides = [1, 1]} : vector<8x96xf32> to vector<8x32xf32>
    %162 = vector.extract_strided_slice %157 {offsets = [0, 64], sizes = [8, 32], strides = [1, 1]} : vector<8x96xf32> to vector<8x32xf32>
    %163 = arith.mulf %161, %121 : vector<8x32xf32>
    %164 = arith.mulf %160, %159 : vector<8x32xf32>
    %165 = arith.addf %163, %164 : vector<8x32xf32>
    %166 = math.tanh %165 : vector<8x32xf32>
    %167 = arith.mulf %162, %166 : vector<8x32xf32>
    %cst_45 = arith.constant dense<0.000000e+00> : vector<8x128xf32>
    %168 = tpu.matmul %167, %1, %cst_45 {dimension_numbers = #tpu.dot_dimension_numbers<[1], [0], [0], [1], [0, 0, 1, 1], [], []>} : vector<8x32xf32>, vector<32x128xf32>, vector<8x128xf32> -> vector<8x128xf32>
    %cst_46 = arith.constant dense<0.000000e+00> : vector<8x128xf32>
    %169 = tpu.matmul %145, %2, %cst_46 {dimension_numbers = #tpu.dot_dimension_numbers<[1], [0], [0], [1], [0, 0, 1, 1], [], []>} : vector<8x32xf32>, vector<32x128xf32>, vector<8x128xf32> -> vector<8x128xf32>
    %170 = arith.addf %168, %169 : vector<8x128xf32>
    %171 = arith.addf %170, %5 : vector<8x128xf32>
    %172 = vector.extract_strided_slice %171 {offsets = [0, 0], sizes = [8, 96], strides = [1, 1]} : vector<8x128xf32> to vector<8x96xf32>
    %cst_47 = arith.constant 5.000000e-01 : f32
    %173 = vector.broadcast %cst_47 : f32 to vector<8x96xf32>
    %174 = arith.mulf %173, %172 : vector<8x96xf32>
    %175 = math.tanh %174 : vector<8x96xf32>
    %cst_48 = arith.constant 1.000000e+00 : f32
    %176 = vector.broadcast %cst_48 : f32 to vector<8x96xf32>
    %177 = arith.addf %175, %176 : vector<8x96xf32>
    %cst_49 = arith.constant 5.000000e-01 : f32
    %178 = vector.broadcast %cst_49 : f32 to vector<8x96xf32>
    %179 = arith.mulf %178, %177 : vector<8x96xf32>
    %180 = vector.extract_strided_slice %171 {offsets = [0, 96], sizes = [8, 32], strides = [1, 1]} : vector<8x128xf32> to vector<8x32xf32>
    %181 = math.tanh %180 : vector<8x32xf32>
    %182 = vector.extract_strided_slice %179 {offsets = [0, 0], sizes = [8, 32], strides = [1, 1]} : vector<8x96xf32> to vector<8x32xf32>
    %183 = vector.extract_strided_slice %179 {offsets = [0, 32], sizes = [8, 32], strides = [1, 1]} : vector<8x96xf32> to vector<8x32xf32>
    %184 = vector.extract_strided_slice %179 {offsets = [0, 64], sizes = [8, 32], strides = [1, 1]} : vector<8x96xf32> to vector<8x32xf32>
    %185 = arith.mulf %183, %143 : vector<8x32xf32>
    %186 = arith.mulf %182, %181 : vector<8x32xf32>
    %187 = arith.addf %185, %186 : vector<8x32xf32>
    %188 = math.tanh %187 : vector<8x32xf32>
    %189 = arith.mulf %184, %188 : vector<8x32xf32>
    %190 = vector.extract_strided_slice %12 {offsets = [4, 0, 0], sizes = [1, 8, 128], strides = [1, 1, 1]} : vector<8x8x128xf32> to vector<1x8x128xf32>
    %191 = vector.shape_cast %190 : vector<1x8x128xf32> to vector<8x128xf32>
    %cst_50 = arith.constant dense<0.000000e+00> : vector<8x128xf32>
    %192 = tpu.matmul %167, %0, %cst_50 {dimension_numbers = #tpu.dot_dimension_numbers<[1], [0], [0], [1], [0, 0, 1, 1], [], []>} : vector<8x32xf32>, vector<32x128xf32>, vector<8x128xf32> -> vector<8x128xf32>
    %193 = arith.addf %191, %192 : vector<8x128xf32>
    %194 = vector.extract_strided_slice %193 {offsets = [0, 0], sizes = [8, 96], strides = [1, 1]} : vector<8x128xf32> to vector<8x96xf32>
    %cst_51 = arith.constant 5.000000e-01 : f32
    %195 = vector.broadcast %cst_51 : f32 to vector<8x96xf32>
    %196 = arith.mulf %195, %194 : vector<8x96xf32>
    %197 = math.tanh %196 : vector<8x96xf32>
    %cst_52 = arith.constant 1.000000e+00 : f32
    %198 = vector.broadcast %cst_52 : f32 to vector<8x96xf32>
    %199 = arith.addf %197, %198 : vector<8x96xf32>
    %cst_53 = arith.constant 5.000000e-01 : f32
    %200 = vector.broadcast %cst_53 : f32 to vector<8x96xf32>
    %201 = arith.mulf %200, %199 : vector<8x96xf32>
    %202 = vector.extract_strided_slice %193 {offsets = [0, 96], sizes = [8, 32], strides = [1, 1]} : vector<8x128xf32> to vector<8x32xf32>
    %203 = math.tanh %202 : vector<8x32xf32>
    %204 = vector.extract_strided_slice %201 {offsets = [0, 0], sizes = [8, 32], strides = [1, 1]} : vector<8x96xf32> to vector<8x32xf32>
    %205 = vector.extract_strided_slice %201 {offsets = [0, 32], sizes = [8, 32], strides = [1, 1]} : vector<8x96xf32> to vector<8x32xf32>
    %206 = vector.extract_strided_slice %201 {offsets = [0, 64], sizes = [8, 32], strides = [1, 1]} : vector<8x96xf32> to vector<8x32xf32>
    %207 = arith.mulf %205, %165 : vector<8x32xf32>
    %208 = arith.mulf %204, %203 : vector<8x32xf32>
    %209 = arith.addf %207, %208 : vector<8x32xf32>
    %210 = math.tanh %209 : vector<8x32xf32>
    %211 = arith.mulf %206, %210 : vector<8x32xf32>
    %cst_54 = arith.constant dense<0.000000e+00> : vector<8x128xf32>
    %212 = tpu.matmul %211, %1, %cst_54 {dimension_numbers = #tpu.dot_dimension_numbers<[1], [0], [0], [1], [0, 0, 1, 1], [], []>} : vector<8x32xf32>, vector<32x128xf32>, vector<8x128xf32> -> vector<8x128xf32>
    %cst_55 = arith.constant dense<0.000000e+00> : vector<8x128xf32>
    %213 = tpu.matmul %189, %2, %cst_55 {dimension_numbers = #tpu.dot_dimension_numbers<[1], [0], [0], [1], [0, 0, 1, 1], [], []>} : vector<8x32xf32>, vector<32x128xf32>, vector<8x128xf32> -> vector<8x128xf32>
    %214 = arith.addf %212, %213 : vector<8x128xf32>
    %215 = arith.addf %214, %5 : vector<8x128xf32>
    %216 = vector.extract_strided_slice %215 {offsets = [0, 0], sizes = [8, 96], strides = [1, 1]} : vector<8x128xf32> to vector<8x96xf32>
    %cst_56 = arith.constant 5.000000e-01 : f32
    %217 = vector.broadcast %cst_56 : f32 to vector<8x96xf32>
    %218 = arith.mulf %217, %216 : vector<8x96xf32>
    %219 = math.tanh %218 : vector<8x96xf32>
    %cst_57 = arith.constant 1.000000e+00 : f32
    %220 = vector.broadcast %cst_57 : f32 to vector<8x96xf32>
    %221 = arith.addf %219, %220 : vector<8x96xf32>
    %cst_58 = arith.constant 5.000000e-01 : f32
    %222 = vector.broadcast %cst_58 : f32 to vector<8x96xf32>
    %223 = arith.mulf %222, %221 : vector<8x96xf32>
    %224 = vector.extract_strided_slice %215 {offsets = [0, 96], sizes = [8, 32], strides = [1, 1]} : vector<8x128xf32> to vector<8x32xf32>
    %225 = math.tanh %224 : vector<8x32xf32>
    %226 = vector.extract_strided_slice %223 {offsets = [0, 0], sizes = [8, 32], strides = [1, 1]} : vector<8x96xf32> to vector<8x32xf32>
    %227 = vector.extract_strided_slice %223 {offsets = [0, 32], sizes = [8, 32], strides = [1, 1]} : vector<8x96xf32> to vector<8x32xf32>
    %228 = vector.extract_strided_slice %223 {offsets = [0, 64], sizes = [8, 32], strides = [1, 1]} : vector<8x96xf32> to vector<8x32xf32>
    %229 = arith.mulf %227, %187 : vector<8x32xf32>
    %230 = arith.mulf %226, %225 : vector<8x32xf32>
    %231 = arith.addf %229, %230 : vector<8x32xf32>
    %232 = math.tanh %231 : vector<8x32xf32>
    %233 = arith.mulf %228, %232 : vector<8x32xf32>
    %234 = vector.extract_strided_slice %12 {offsets = [5, 0, 0], sizes = [1, 8, 128], strides = [1, 1, 1]} : vector<8x8x128xf32> to vector<1x8x128xf32>
    %235 = vector.shape_cast %234 : vector<1x8x128xf32> to vector<8x128xf32>
    %cst_59 = arith.constant dense<0.000000e+00> : vector<8x128xf32>
    %236 = tpu.matmul %211, %0, %cst_59 {dimension_numbers = #tpu.dot_dimension_numbers<[1], [0], [0], [1], [0, 0, 1, 1], [], []>} : vector<8x32xf32>, vector<32x128xf32>, vector<8x128xf32> -> vector<8x128xf32>
    %237 = arith.addf %235, %236 : vector<8x128xf32>
    %238 = vector.extract_strided_slice %237 {offsets = [0, 0], sizes = [8, 96], strides = [1, 1]} : vector<8x128xf32> to vector<8x96xf32>
    %cst_60 = arith.constant 5.000000e-01 : f32
    %239 = vector.broadcast %cst_60 : f32 to vector<8x96xf32>
    %240 = arith.mulf %239, %238 : vector<8x96xf32>
    %241 = math.tanh %240 : vector<8x96xf32>
    %cst_61 = arith.constant 1.000000e+00 : f32
    %242 = vector.broadcast %cst_61 : f32 to vector<8x96xf32>
    %243 = arith.addf %241, %242 : vector<8x96xf32>
    %cst_62 = arith.constant 5.000000e-01 : f32
    %244 = vector.broadcast %cst_62 : f32 to vector<8x96xf32>
    %245 = arith.mulf %244, %243 : vector<8x96xf32>
    %246 = vector.extract_strided_slice %237 {offsets = [0, 96], sizes = [8, 32], strides = [1, 1]} : vector<8x128xf32> to vector<8x32xf32>
    %247 = math.tanh %246 : vector<8x32xf32>
    %248 = vector.extract_strided_slice %245 {offsets = [0, 0], sizes = [8, 32], strides = [1, 1]} : vector<8x96xf32> to vector<8x32xf32>
    %249 = vector.extract_strided_slice %245 {offsets = [0, 32], sizes = [8, 32], strides = [1, 1]} : vector<8x96xf32> to vector<8x32xf32>
    %250 = vector.extract_strided_slice %245 {offsets = [0, 64], sizes = [8, 32], strides = [1, 1]} : vector<8x96xf32> to vector<8x32xf32>
    %251 = arith.mulf %249, %209 : vector<8x32xf32>
    %252 = arith.mulf %248, %247 : vector<8x32xf32>
    %253 = arith.addf %251, %252 : vector<8x32xf32>
    %254 = math.tanh %253 : vector<8x32xf32>
    %255 = arith.mulf %250, %254 : vector<8x32xf32>
    %cst_63 = arith.constant dense<0.000000e+00> : vector<8x128xf32>
    %256 = tpu.matmul %255, %1, %cst_63 {dimension_numbers = #tpu.dot_dimension_numbers<[1], [0], [0], [1], [0, 0, 1, 1], [], []>} : vector<8x32xf32>, vector<32x128xf32>, vector<8x128xf32> -> vector<8x128xf32>
    %cst_64 = arith.constant dense<0.000000e+00> : vector<8x128xf32>
    %257 = tpu.matmul %233, %2, %cst_64 {dimension_numbers = #tpu.dot_dimension_numbers<[1], [0], [0], [1], [0, 0, 1, 1], [], []>} : vector<8x32xf32>, vector<32x128xf32>, vector<8x128xf32> -> vector<8x128xf32>
    %258 = arith.addf %256, %257 : vector<8x128xf32>
    %259 = arith.addf %258, %5 : vector<8x128xf32>
    %260 = vector.extract_strided_slice %259 {offsets = [0, 0], sizes = [8, 96], strides = [1, 1]} : vector<8x128xf32> to vector<8x96xf32>
    %cst_65 = arith.constant 5.000000e-01 : f32
    %261 = vector.broadcast %cst_65 : f32 to vector<8x96xf32>
    %262 = arith.mulf %261, %260 : vector<8x96xf32>
    %263 = math.tanh %262 : vector<8x96xf32>
    %cst_66 = arith.constant 1.000000e+00 : f32
    %264 = vector.broadcast %cst_66 : f32 to vector<8x96xf32>
    %265 = arith.addf %263, %264 : vector<8x96xf32>
    %cst_67 = arith.constant 5.000000e-01 : f32
    %266 = vector.broadcast %cst_67 : f32 to vector<8x96xf32>
    %267 = arith.mulf %266, %265 : vector<8x96xf32>
    %268 = vector.extract_strided_slice %259 {offsets = [0, 96], sizes = [8, 32], strides = [1, 1]} : vector<8x128xf32> to vector<8x32xf32>
    %269 = math.tanh %268 : vector<8x32xf32>
    %270 = vector.extract_strided_slice %267 {offsets = [0, 0], sizes = [8, 32], strides = [1, 1]} : vector<8x96xf32> to vector<8x32xf32>
    %271 = vector.extract_strided_slice %267 {offsets = [0, 32], sizes = [8, 32], strides = [1, 1]} : vector<8x96xf32> to vector<8x32xf32>
    %272 = vector.extract_strided_slice %267 {offsets = [0, 64], sizes = [8, 32], strides = [1, 1]} : vector<8x96xf32> to vector<8x32xf32>
    %273 = arith.mulf %271, %231 : vector<8x32xf32>
    %274 = arith.mulf %270, %269 : vector<8x32xf32>
    %275 = arith.addf %273, %274 : vector<8x32xf32>
    %276 = math.tanh %275 : vector<8x32xf32>
    %277 = arith.mulf %272, %276 : vector<8x32xf32>
    %278 = vector.extract_strided_slice %12 {offsets = [6, 0, 0], sizes = [1, 8, 128], strides = [1, 1, 1]} : vector<8x8x128xf32> to vector<1x8x128xf32>
    %279 = vector.shape_cast %278 : vector<1x8x128xf32> to vector<8x128xf32>
    %cst_68 = arith.constant dense<0.000000e+00> : vector<8x128xf32>
    %280 = tpu.matmul %255, %0, %cst_68 {dimension_numbers = #tpu.dot_dimension_numbers<[1], [0], [0], [1], [0, 0, 1, 1], [], []>} : vector<8x32xf32>, vector<32x128xf32>, vector<8x128xf32> -> vector<8x128xf32>
    %281 = arith.addf %279, %280 : vector<8x128xf32>
    %282 = vector.extract_strided_slice %281 {offsets = [0, 0], sizes = [8, 96], strides = [1, 1]} : vector<8x128xf32> to vector<8x96xf32>
    %cst_69 = arith.constant 5.000000e-01 : f32
    %283 = vector.broadcast %cst_69 : f32 to vector<8x96xf32>
    %284 = arith.mulf %283, %282 : vector<8x96xf32>
    %285 = math.tanh %284 : vector<8x96xf32>
    %cst_70 = arith.constant 1.000000e+00 : f32
    %286 = vector.broadcast %cst_70 : f32 to vector<8x96xf32>
    %287 = arith.addf %285, %286 : vector<8x96xf32>
    %cst_71 = arith.constant 5.000000e-01 : f32
    %288 = vector.broadcast %cst_71 : f32 to vector<8x96xf32>
    %289 = arith.mulf %288, %287 : vector<8x96xf32>
    %290 = vector.extract_strided_slice %281 {offsets = [0, 96], sizes = [8, 32], strides = [1, 1]} : vector<8x128xf32> to vector<8x32xf32>
    %291 = math.tanh %290 : vector<8x32xf32>
    %292 = vector.extract_strided_slice %289 {offsets = [0, 0], sizes = [8, 32], strides = [1, 1]} : vector<8x96xf32> to vector<8x32xf32>
    %293 = vector.extract_strided_slice %289 {offsets = [0, 32], sizes = [8, 32], strides = [1, 1]} : vector<8x96xf32> to vector<8x32xf32>
    %294 = vector.extract_strided_slice %289 {offsets = [0, 64], sizes = [8, 32], strides = [1, 1]} : vector<8x96xf32> to vector<8x32xf32>
    %295 = arith.mulf %293, %253 : vector<8x32xf32>
    %296 = arith.mulf %292, %291 : vector<8x32xf32>
    %297 = arith.addf %295, %296 : vector<8x32xf32>
    %298 = math.tanh %297 : vector<8x32xf32>
    %299 = arith.mulf %294, %298 : vector<8x32xf32>
    %cst_72 = arith.constant dense<0.000000e+00> : vector<8x128xf32>
    %300 = tpu.matmul %299, %1, %cst_72 {dimension_numbers = #tpu.dot_dimension_numbers<[1], [0], [0], [1], [0, 0, 1, 1], [], []>} : vector<8x32xf32>, vector<32x128xf32>, vector<8x128xf32> -> vector<8x128xf32>
    %cst_73 = arith.constant dense<0.000000e+00> : vector<8x128xf32>
    %301 = tpu.matmul %277, %2, %cst_73 {dimension_numbers = #tpu.dot_dimension_numbers<[1], [0], [0], [1], [0, 0, 1, 1], [], []>} : vector<8x32xf32>, vector<32x128xf32>, vector<8x128xf32> -> vector<8x128xf32>
    %302 = arith.addf %300, %301 : vector<8x128xf32>
    %303 = arith.addf %302, %5 : vector<8x128xf32>
    %304 = vector.extract_strided_slice %303 {offsets = [0, 0], sizes = [8, 96], strides = [1, 1]} : vector<8x128xf32> to vector<8x96xf32>
    %cst_74 = arith.constant 5.000000e-01 : f32
    %305 = vector.broadcast %cst_74 : f32 to vector<8x96xf32>
    %306 = arith.mulf %305, %304 : vector<8x96xf32>
    %307 = math.tanh %306 : vector<8x96xf32>
    %cst_75 = arith.constant 1.000000e+00 : f32
    %308 = vector.broadcast %cst_75 : f32 to vector<8x96xf32>
    %309 = arith.addf %307, %308 : vector<8x96xf32>
    %cst_76 = arith.constant 5.000000e-01 : f32
    %310 = vector.broadcast %cst_76 : f32 to vector<8x96xf32>
    %311 = arith.mulf %310, %309 : vector<8x96xf32>
    %312 = vector.extract_strided_slice %303 {offsets = [0, 96], sizes = [8, 32], strides = [1, 1]} : vector<8x128xf32> to vector<8x32xf32>
    %313 = math.tanh %312 : vector<8x32xf32>
    %314 = vector.extract_strided_slice %311 {offsets = [0, 0], sizes = [8, 32], strides = [1, 1]} : vector<8x96xf32> to vector<8x32xf32>
    %315 = vector.extract_strided_slice %311 {offsets = [0, 32], sizes = [8, 32], strides = [1, 1]} : vector<8x96xf32> to vector<8x32xf32>
    %316 = vector.extract_strided_slice %311 {offsets = [0, 64], sizes = [8, 32], strides = [1, 1]} : vector<8x96xf32> to vector<8x32xf32>
    %317 = arith.mulf %315, %275 : vector<8x32xf32>
    %318 = arith.mulf %314, %313 : vector<8x32xf32>
    %319 = arith.addf %317, %318 : vector<8x32xf32>
    %320 = math.tanh %319 : vector<8x32xf32>
    %321 = arith.mulf %316, %320 : vector<8x32xf32>
    %322 = vector.extract_strided_slice %12 {offsets = [7, 0, 0], sizes = [1, 8, 128], strides = [1, 1, 1]} : vector<8x8x128xf32> to vector<1x8x128xf32>
    %323 = vector.shape_cast %322 : vector<1x8x128xf32> to vector<8x128xf32>
    %cst_77 = arith.constant dense<0.000000e+00> : vector<8x128xf32>
    %324 = tpu.matmul %299, %0, %cst_77 {dimension_numbers = #tpu.dot_dimension_numbers<[1], [0], [0], [1], [0, 0, 1, 1], [], []>} : vector<8x32xf32>, vector<32x128xf32>, vector<8x128xf32> -> vector<8x128xf32>
    %325 = arith.addf %323, %324 : vector<8x128xf32>
    %326 = vector.extract_strided_slice %325 {offsets = [0, 0], sizes = [8, 96], strides = [1, 1]} : vector<8x128xf32> to vector<8x96xf32>
    %cst_78 = arith.constant 5.000000e-01 : f32
    %327 = vector.broadcast %cst_78 : f32 to vector<8x96xf32>
    %328 = arith.mulf %327, %326 : vector<8x96xf32>
    %329 = math.tanh %328 : vector<8x96xf32>
    %cst_79 = arith.constant 1.000000e+00 : f32
    %330 = vector.broadcast %cst_79 : f32 to vector<8x96xf32>
    %331 = arith.addf %329, %330 : vector<8x96xf32>
    %cst_80 = arith.constant 5.000000e-01 : f32
    %332 = vector.broadcast %cst_80 : f32 to vector<8x96xf32>
    %333 = arith.mulf %332, %331 : vector<8x96xf32>
    %334 = vector.extract_strided_slice %325 {offsets = [0, 96], sizes = [8, 32], strides = [1, 1]} : vector<8x128xf32> to vector<8x32xf32>
    %335 = math.tanh %334 : vector<8x32xf32>
    %336 = vector.extract_strided_slice %333 {offsets = [0, 0], sizes = [8, 32], strides = [1, 1]} : vector<8x96xf32> to vector<8x32xf32>
    %337 = vector.extract_strided_slice %333 {offsets = [0, 32], sizes = [8, 32], strides = [1, 1]} : vector<8x96xf32> to vector<8x32xf32>
    %338 = vector.extract_strided_slice %333 {offsets = [0, 64], sizes = [8, 32], strides = [1, 1]} : vector<8x96xf32> to vector<8x32xf32>
    %339 = arith.mulf %337, %297 : vector<8x32xf32>
    %340 = arith.mulf %336, %335 : vector<8x32xf32>
    %341 = arith.addf %339, %340 : vector<8x32xf32>
    %342 = math.tanh %341 : vector<8x32xf32>
    %343 = arith.mulf %338, %342 : vector<8x32xf32>
    %cst_81 = arith.constant dense<0.000000e+00> : vector<8x128xf32>
    %344 = tpu.matmul %343, %1, %cst_81 {dimension_numbers = #tpu.dot_dimension_numbers<[1], [0], [0], [1], [0, 0, 1, 1], [], []>} : vector<8x32xf32>, vector<32x128xf32>, vector<8x128xf32> -> vector<8x128xf32>
    %cst_82 = arith.constant dense<0.000000e+00> : vector<8x128xf32>
    %345 = tpu.matmul %321, %2, %cst_82 {dimension_numbers = #tpu.dot_dimension_numbers<[1], [0], [0], [1], [0, 0, 1, 1], [], []>} : vector<8x32xf32>, vector<32x128xf32>, vector<8x128xf32> -> vector<8x128xf32>
    %346 = arith.addf %344, %345 : vector<8x128xf32>
    %347 = arith.addf %346, %5 : vector<8x128xf32>
    %348 = vector.extract_strided_slice %347 {offsets = [0, 0], sizes = [8, 96], strides = [1, 1]} : vector<8x128xf32> to vector<8x96xf32>
    %cst_83 = arith.constant 5.000000e-01 : f32
    %349 = vector.broadcast %cst_83 : f32 to vector<8x96xf32>
    %350 = arith.mulf %349, %348 : vector<8x96xf32>
    %351 = math.tanh %350 : vector<8x96xf32>
    %cst_84 = arith.constant 1.000000e+00 : f32
    %352 = vector.broadcast %cst_84 : f32 to vector<8x96xf32>
    %353 = arith.addf %351, %352 : vector<8x96xf32>
    %cst_85 = arith.constant 5.000000e-01 : f32
    %354 = vector.broadcast %cst_85 : f32 to vector<8x96xf32>
    %355 = arith.mulf %354, %353 : vector<8x96xf32>
    %356 = vector.extract_strided_slice %347 {offsets = [0, 96], sizes = [8, 32], strides = [1, 1]} : vector<8x128xf32> to vector<8x32xf32>
    %357 = math.tanh %356 : vector<8x32xf32>
    %358 = vector.extract_strided_slice %355 {offsets = [0, 0], sizes = [8, 32], strides = [1, 1]} : vector<8x96xf32> to vector<8x32xf32>
    %359 = vector.extract_strided_slice %355 {offsets = [0, 32], sizes = [8, 32], strides = [1, 1]} : vector<8x96xf32> to vector<8x32xf32>
    %360 = vector.extract_strided_slice %355 {offsets = [0, 64], sizes = [8, 32], strides = [1, 1]} : vector<8x96xf32> to vector<8x32xf32>
    %361 = arith.mulf %359, %319 : vector<8x32xf32>
    %362 = arith.mulf %358, %357 : vector<8x32xf32>
    %363 = arith.addf %361, %362 : vector<8x32xf32>
    %364 = math.tanh %363 : vector<8x32xf32>
    %365 = arith.mulf %360, %364 : vector<8x32xf32>
    %c0_86 = arith.constant 0 : index
    %c0_87 = arith.constant 0 : index
    %366 = vector.load %arg7[%c0_86, %c0_87] : memref<32x128xf32, #tpu.memory_space<vmem>>, vector<32x128xf32>
    %cst_88 = arith.constant dense<0.000000e+00> : vector<8x128xf32>
    %367 = tpu.matmul %365, %366, %cst_88 {dimension_numbers = #tpu.dot_dimension_numbers<[1], [0], [0], [1], [0, 0, 1, 1], [], []>} : vector<8x32xf32>, vector<32x128xf32>, vector<8x128xf32> -> vector<8x128xf32>
    %c0_89 = arith.constant 0 : index
    %c0_90 = arith.constant 0 : index
    %368 = vector.load %arg8[%c0_89, %c0_90] : memref<1x128xf32, #tpu.memory_space<vmem>>, vector<1x128xf32>
    %369 = vector.broadcast %368 : vector<1x128xf32> to vector<8x128xf32>
    %370 = arith.addf %367, %369 : vector<8x128xf32>
    %c0_91 = arith.constant 0 : index
    %c0_92 = arith.constant 0 : index
    %371 = vector.load %arg9[%c0_91, %c0_92] : memref<8x128xf32, #tpu.memory_space<vmem>>, vector<8x128xf32>
    tpu.vector_store %arg9[%c0_91, %c0_92], %370 {strides = array<i32>} : memref<8x128xf32, #tpu.memory_space<vmem>>, vector<8x128xf32>,
    return
  }
}

</mosaic_0001>

<llo_original>
// kernel: name_classifier_forward.1
$region0: #{name_classifier_forward.1}
  #allocation0 [shape = 'u32[]', space=smem, size = 0x4, offset = 0x4, fixed_abs, tag = 'smem constant byte address 0x4 - core index']
  #allocation1 [shape = 'u32[144,128]{1,0:T(1,128)}', space=vmem, size = 0x12000, scoped, tag = 'internal scratch']
  %s0 = inlined_call_operand.vmem [shape: f32[64,16], index: 0, kind: input, shape index: {}]
  %s1 = inlined_call_operand.hbm [shape: f32[16,128], index: 1, kind: input, shape index: {}]
  %s2 = inlined_call_operand.vmem [shape: f32[32,128], index: 2, kind: input, shape index: {}]
  %s3 = inlined_call_operand.vmem [shape: f32[1,128], index: 3, kind: input, shape index: {}]
  %s4 = inlined_call_operand.vmem [shape: f32[32,128], index: 4, kind: input, shape index: {}]
  %s5 = inlined_call_operand.vmem [shape: f32[32,128], index: 5, kind: input, shape index: {}]
  %s6 = inlined_call_operand.vmem [shape: f32[1,128], index: 6, kind: input, shape index: {}]
  %s7 = inlined_call_operand.vmem [shape: f32[32,128], index: 7, kind: input, shape index: {}]
  %s8 = inlined_call_operand.hbm [shape: f32[1,128], index: 8, kind: input, shape index: {}]
  %s9 = inlined_call_operand.vmem [shape: f32[8,128], index: 9, kind: output, shape index: {}]
  %s10 = sld [smem:[#allocation0]]
  $region54: #{name_classifier_forward.1} parent=0
    _
  %s12 = ssub.s32 1, %s10
  %s13 = scalar_select 0, %s12, %s10
  $region1: #{name_classifier_forward.1} parent=0
    #allocation2 [shape = 'u8[8192]{0}', space=vmem, size = 0x2000, scoped, tag = 'input window, operand 1, single buffered']
    #allocation3 [shape = 's32[1]{0}', space=sflag, size = 0x4, scoped, tag = 'scoped memory for name_classifier_forward.1']
    #allocation4 [shape = 'u8[512]{0}', space=vmem, size = 0x400, scoped, tag = 'input window, operand 8, single buffered']
    #allocation5 [shape = 's32[1]{0}', space=sflag, size = 0x4, scoped, tag = 'scoped memory for name_classifier_forward.1']
    %14 = vsyncpa [#allocation3], 0
    %15 = vsyncpa [#allocation5], 0
    // Predicated region
    $region2: #{name_classifier_forward.1} parent=1 // pred_check
      _
    $region3: #{name_classifier_forward.1} parent=1 // pred_check_branch
      %17 = sbr.rel (0) target = $region5
    $region4: #{name_classifier_forward.1} parent=1 // pred_region
      _
    $region5: #{name_classifier_forward.1} parent=1 // pred_fallthru
      _
    // Predicated region
    $region6: #{name_classifier_forward.1} parent=1 // pred_check
      _
    $region7: #{name_classifier_forward.1} parent=1 // pred_check_branch
      %19 = sbr.rel (0) target = $region9
    $region8: #{name_classifier_forward.1} parent=1 // pred_region
      %s21 = ssub.s32 256, 256
      %22 = vsyncadd [#allocation3], %s21
      %s23 = sshll.u32 [#allocation2], 4
      %s24 = int_to_ptr.vmem [resolvable:$true] %s23
      %29 = dma.hbm_to_vmem [thread:$0]  %s1, 256, %s24, [#allocation3], 128, 128, 8
    $region9: #{name_classifier_forward.1} parent=1 // pred_fallthru
      _
    // Predicated region
    $region10: #{name_classifier_forward.1} parent=1 // pred_check
      _
    $region11: #{name_classifier_forward.1} parent=1 // pred_check_branch
      %31 = sbr.rel (0) target = $region13
    $region12: #{name_classifier_forward.1} parent=1 // pred_region
      _
    $region13: #{name_classifier_forward.1} parent=1 // pred_fallthru
      _
    // Predicated region
    $region14: #{name_classifier_forward.1} parent=1 // pred_check
      _
    $region15: #{name_classifier_forward.1} parent=1 // pred_check_branch
      %33 = sbr.rel (0) target = $region17
    $region16: #{name_classifier_forward.1} parent=1 // pred_region
      _
    $region17: #{name_classifier_forward.1} parent=1 // pred_fallthru
      _
    // Predicated region
    $region18: #{name_classifier_forward.1} parent=1 // pred_check
      _
    $region19: #{name_classifier_forward.1} parent=1 // pred_check_branch
      %35 = sbr.rel (0) target = $region21
    $region20: #{name_classifier_forward.1} parent=1 // pred_region
      _
    $region21: #{name_classifier_forward.1} parent=1 // pred_fallthru
      _
    // Predicated region
    $region22: #{name_classifier_forward.1} parent=1 // pred_check
      _
    $region23: #{name_classifier_forward.1} parent=1 // pred_check_branch
      %37 = sbr.rel (0) target = $region25
    $region24: #{name_classifier_forward.1} parent=1 // pred_region
      _
    $region25: #{name_classifier_forward.1} parent=1 // pred_fallthru
      _
    // Predicated region
    $region26: #{name_classifier_forward.1} parent=1 // pred_check
      _
    $region27: #{name_classifier_forward.1} parent=1 // pred_check_branch
      %39 = sbr.rel (0) target = $region29
    $region28: #{name_classifier_forward.1} parent=1 // pred_region
      _
    $region29: #{name_classifier_forward.1} parent=1 // pred_fallthru
      _
    // Predicated region
    $region30: #{name_classifier_forward.1} parent=1 // pred_check
      _
    $region31: #{name_classifier_forward.1} parent=1 // pred_check_branch
      %41 = sbr.rel (0) target = $region33
    $region32: #{name_classifier_forward.1} parent=1 // pred_region
      _
    $region33: #{name_classifier_forward.1} parent=1 // pred_fallthru
      _
    // Predicated region
    $region34: #{name_classifier_forward.1} parent=1 // pred_check
      _
    $region35: #{name_classifier_forward.1} parent=1 // pred_check_branch
      %43 = sbr.rel (0) target = $region37
    $region36: #{name_classifier_forward.1} parent=1 // pred_region
      %s45 = ssub.s32 16, 16
      %46 = vsyncadd [#allocation5], %s45
      %s48 = sshll.u32 [#allocation4], 4
      %s49 = int_to_ptr.vmem [resolvable:$true] %s48
      %51 = dma.hbm_to_vmem [thread:$0]  %s8, 16, %s49, [#allocation5]
    $region37: #{name_classifier_forward.1} parent=1 // pred_fallthru
      _
    // Predicated region
    $region38: #{name_classifier_forward.1} parent=1 // pred_check
      _
    $region39: #{name_classifier_forward.1} parent=1 // pred_check_branch
      %53 = sbr.rel (0) target = $region41
    $region40: #{name_classifier_forward.1} parent=1 // pred_region
      %54 = dma.done [#allocation3], 256
    $region41: #{name_classifier_forward.1} parent=1 // pred_fallthru
      _
    // Predicated region
    $region42: #{name_classifier_forward.1} parent=1 // pred_check
      _
    $region43: #{name_classifier_forward.1} parent=1 // pred_check_branch
      %56 = sbr.rel (0) target = $region45
    $region44: #{name_classifier_forward.1} parent=1 // pred_region
      %57 = dma.done [#allocation5], 16
    $region45: #{name_classifier_forward.1} parent=1 // pred_fallthru
      _
    %v58 = vld [vmem:[%s2] sm:$0xff]
    %v59 = vld [vmem:[%s2 + $0x8] sm:$0xff]
    %v60 = vld [vmem:[%s2 + $0x10] sm:$0xff]
    %v61 = vld [vmem:[%s2 + $0x18] sm:$0xff]
    %v62 = vld [vmem:[%s4] sm:$0xff]
    %v63 = vld [vmem:[%s4 + $0x8] sm:$0xff]
    %v64 = vld [vmem:[%s4 + $0x10] sm:$0xff]
    %v65 = vld [vmem:[%s4 + $0x18] sm:$0xff]
    %v66 = vld [vmem:[%s5] sm:$0xff]
    %v67 = vld [vmem:[%s5 + $0x8] sm:$0xff]
    %v68 = vld [vmem:[%s5 + $0x10] sm:$0xff]
    %v69 = vld [vmem:[%s5 + $0x18] sm:$0xff]
    %v70 = vld [vmem:[%s6] sm:$0x1]
    %v72 = vlaneseq
    %v73 = vshrl.u32 %v72, 7
    %v74 = vsub.s32 0, %v73
    %v75 = vrot.slane %v70, %v74
    %v77 = vld [vmem:[%s0] sm:$0xff]
    %v78 = vld [vmem:[%s0 + $0x8] sm:$0xff]
    %v79 = vld [vmem:[%s0 + $0x10] sm:$0xff]
    %v80 = vld [vmem:[%s0 + $0x18] sm:$0xff]
    %v81 = vld [vmem:[%s0 + $0x20] sm:$0xff]
    %v82 = vld [vmem:[%s0 + $0x28] sm:$0xff]
    %v83 = vld [vmem:[%s0 + $0x30] sm:$0xff]
    %v84 = vld [vmem:[%s0 + $0x38] sm:$0xff]
    %v85 = vld [vmem:[#allocation2] sm:$0xff]
    %v86 = vld [vmem:[#allocation2 + $0x8] sm:$0xff]
    %v87 = vld [vmem:[%s3] sm:$0x1]
    %v89 = vlaneseq
    %v90 = vshrl.u32 %v89, 7
    %v91 = vsub.s32 0, %v90
    %v92 = vrot.slane %v87, %v91
    %vm94 = vcmask 130048
    %v96 = vsel %vm94, %v77, 0
    %v99 = vsel %vm94, %v78, 0
    %v102 = vsel %vm94, %v79, 0
    %v105 = vsel %vm94, %v80, 0
    %v108 = vsel %vm94, %v81, 0
    %v111 = vsel %vm94, %v82, 0
    %v114 = vsel %vm94, %v83, 0
    %v117 = vsel %vm94, %v84, 0
    %119 = vmatprep.subr.mxu0 0.0
    %120 = vmatpush1.msra.mxu0 %v85
    %121 = vmatprep.subr.mxu0 0.0
    %122 = vmatpush1.msra.mxu0 %v86
    %123 = vmatprep.subr.mxu0 0.0
    %124 = vmatpush1.msra.mxu0 0.0
    %125 = vmatprep.subr.mxu0 0.0
    %126 = vmatpush1.msra.mxu0 0.0
    %127 = vmatprep.subr.mxu0 0.0
    %128 = vmatpush1.msra.mxu0 0.0
    %129 = vmatprep.subr.mxu0 0.0
    %130 = vmatpush1.msra.mxu0 0.0
    %131 = vmatprep.subr.mxu0 0.0
    %132 = vmatpush1.msra.mxu0 0.0
    %133 = vmatprep.subr.mxu0 0.0
    %134 = vmatpush1.msra.mxu0 0.0
    %135 = vmatprep.subr.mxu0 0.0
    %136 = vmatpush1.msra.mxu0 0.0
    %137 = vmatprep.subr.mxu0 0.0
    %138 = vmatpush1.msra.mxu0 0.0
    %139 = vmatprep.subr.mxu0 0.0
    %140 = vmatpush1.msra.mxu0 0.0
    %141 = vmatprep.subr.mxu0 0.0
    %142 = vmatpush1.msra.mxu0 0.0
    %143 = vmatprep.subr.mxu0 0.0
    %144 = vmatpush1.msra.mxu0 0.0
    %145 = vmatprep.subr.mxu0 0.0
    %146 = vmatpush1.msra.mxu0 0.0
    %147 = vmatprep.subr.mxu0 0.0
    %148 = vmatpush1.msra.mxu0 0.0
    %149 = vmatprep.subr.mxu0 0.0
    %150 = vmatpush1.msra.mxu0 0.0
    %151 = vmatprep.subr.mxu0 0.0
    %152 = vmatpush1.msra.mxu0 0.0
    %153 = vmatprep.subr.mxu0 0.0
    %154 = vmatpush1.msra.mxu0 0.0
    %155 = vmatprep.subr.mxu0 0.0
    %156 = vmatpush1.msra.mxu0 0.0
    %157 = vmatprep.subr.mxu0 0.0
    %158 = vmatpush1.msra.mxu0 0.0
    %159 = vmatprep.subr.mxu0 0.0
    %160 = vmatpush1.msra.mxu0 0.0
    %161 = vmatprep.subr.mxu0 0.0
    %162 = vmatpush1.msra.mxu0 0.0
    %163 = vmatprep.subr.mxu0 0.0
    %164 = vmatpush1.msra.mxu0 0.0
    %165 = vmatprep.subr.mxu0 0.0
    %166 = vmatpush1.msra.mxu0 0.0
    %167 = vmatprep.subr.mxu0 0.0
    %168 = vmatpush1.msra.mxu0 0.0
    %169 = vmatprep.subr.mxu0 0.0
    %170 = vmatpush1.msra.mxu0 0.0
    %171 = vmatprep.subr.mxu0 0.0
    %172 = vmatpush1.msra.mxu0 0.0
    %173 = vmatprep.subr.mxu0 0.0
    %174 = vmatpush1.msra.mxu0 0.0
    %175 = vmatprep.subr.mxu0 0.0
    %176 = vmatpush1.msra.mxu0 0.0
    %177 = vmatprep.subr.mxu0 0.0
    %178 = vmatpush1.msra.mxu0 0.0
    %179 = vmatprep.subr.mxu0 0.0
    %180 = vmatpush1.msra.mxu0 0.0
    %181 = vmatprep.subr.mxu0 0.0
    %182 = vmatpush1.msra.mxu0 0.0
    %183 = vmatprep.mubr.f32.mxu0 0.0
    %184 = vmatmul.mubr.f32.gmra.mrb[0].mxu0 %v96
    %v185 = vpop.f32.mrb[0].mxu0
    %v186 = vadd.f32 %v92, %v185
    %v187 = vpop.f32.mrb[0].mxu0
    %188 = vmatprep.mubr.f32.mxu0 0.0
    %189 = vmatmul.mubr.f32.gmra.mrb[0].mxu0 %v99
    %v190 = vpop.f32.mrb[0].mxu0
    %v191 = vadd.f32 %v92, %v190
    %v192 = vpop.f32.mrb[0].mxu0
    %193 = vmatprep.mubr.f32.mxu0 0.0
    %194 = vmatmul.mubr.f32.gmra.mrb[0].mxu0 %v102
    %v195 = vpop.f32.mrb[0].mxu0
    %v196 = vadd.f32 %v92, %v195
    %v197 = vpop.f32.mrb[0].mxu0
    %198 = vmatprep.mubr.f32.mxu0 0.0
    %199 = vmatmul.mubr.f32.gmra.mrb[0].mxu0 %v105
    %v200 = vpop.f32.mrb[0].mxu0
    %v201 = vadd.f32 %v92, %v200
    %v202 = vpop.f32.mrb[0].mxu0
    %203 = vmatprep.mubr.f32.mxu0 0.0
    %204 = vmatmul.mubr.f32.gmra.mrb[0].mxu0 %v108
    %v205 = vpop.f32.mrb[0].mxu0
    %v206 = vadd.f32 %v92, %v205
    %v207 = vpop.f32.mrb[0].mxu0
    %208 = vmatprep.mubr.f32.mxu0 0.0
    %209 = vmatmul.mubr.f32.gmra.mrb[0].mxu0 %v111
    %v210 = vpop.f32.mrb[0].mxu0
    %v211 = vadd.f32 %v92, %v210
    %v212 = vpop.f32.mrb[0].mxu0
    %213 = vmatprep.mubr.f32.mxu0 0.0
    %214 = vmatmul.mubr.f32.gmra.mrb[0].mxu0 %v114
    %v215 = vpop.f32.mrb[0].mxu0
    %v216 = vadd.f32 %v92, %v215
    %v217 = vpop.f32.mrb[0].mxu0
    %218 = vmatprep.mubr.f32.mxu0 0.0
    %219 = vmatmul.mubr.f32.gmra.mrb[0].mxu0 %v117
    %v220 = vpop.f32.mrb[0].mxu0
    %v221 = vadd.f32 %v92, %v220
    %v222 = vpop.f32.mrb[0].mxu0
    %223 = vdwg.mxu0
    %vm224 = vcmask 261120
    %v226 = vsel %vm224, 0.0, 0
    %228 = vmatprep.subr.mxu0 0.0
    %229 = vmatpush1.msra.mxu0 %v58
    %230 = vmatprep.subr.mxu0 0.0
    %231 = vmatpush1.msra.mxu0 %v59
    %232 = vmatprep.subr.mxu0 0.0
    %233 = vmatpush1.msra.mxu0 %v60
    %234 = vmatprep.subr.mxu0 0.0
    %235 = vmatpush1.msra.mxu0 %v61
    %236 = vmatprep.subr.mxu0 0.0
    %237 = vmatpush1.msra.mxu0 0.0
    %238 = vmatprep.subr.mxu0 0.0
    %239 = vmatpush1.msra.mxu0 0.0
    %240 = vmatprep.subr.mxu0 0.0
    %241 = vmatpush1.msra.mxu0 0.0
    %242 = vmatprep.subr.mxu0 0.0
    %243 = vmatpush1.msra.mxu0 0.0
    %244 = vmatprep.subr.mxu0 0.0
    %245 = vmatpush1.msra.mxu0 0.0
    %246 = vmatprep.subr.mxu0 0.0
    %247 = vmatpush1.msra.mxu0 0.0
    %248 = vmatprep.subr.mxu0 0.0
    %249 = vmatpush1.msra.mxu0 0.0
    %250 = vmatprep.subr.mxu0 0.0
    %251 = vmatpush1.msra.mxu0 0.0
    %252 = vmatprep.subr.mxu0 0.0
    %253 = vmatpush1.msra.mxu0 0.0
    %254 = vmatprep.subr.mxu0 0.0
    %255 = vmatpush1.msra.mxu0 0.0
    %256 = vmatprep.subr.mxu0 0.0
    %257 = vmatpush1.msra.mxu0 0.0
    %258 = vmatprep.subr.mxu0 0.0
    %259 = vmatpush1.msra.mxu0 0.0
    %260 = vmatprep.subr.mxu0 0.0
    %261 = vmatpush1.msra.mxu0 0.0
    %262 = vmatprep.subr.mxu0 0.0
    %263 = vmatpush1.msra.mxu0 0.0
    %264 = vmatprep.subr.mxu0 0.0
    %265 = vmatpush1.msra.mxu0 0.0
    %266 = vmatprep.subr.mxu0 0.0
    %267 = vmatpush1.msra.mxu0 0.0
    %268 = vmatprep.subr.mxu0 0.0
    %269 = vmatpush1.msra.mxu0 0.0
    %270 = vmatprep.subr.mxu0 0.0
    %271 = vmatpush1.msra.mxu0 0.0
    %272 = vmatprep.subr.mxu0 0.0
    %273 = vmatpush1.msra.mxu0 0.0
    %274 = vmatprep.subr.mxu0 0.0
    %275 = vmatpush1.msra.mxu0 0.0
    %276 = vmatprep.subr.mxu0 0.0
    %277 = vmatpush1.msra.mxu0 0.0
    %278 = vmatprep.subr.mxu0 0.0
    %279 = vmatpush1.msra.mxu0 0.0
    %280 = vmatprep.subr.mxu0 0.0
    %281 = vmatpush1.msra.mxu0 0.0
    %282 = vmatprep.subr.mxu0 0.0
    %283 = vmatpush1.msra.mxu0 0.0
    %284 = vmatprep.subr.mxu0 0.0
    %285 = vmatpush1.msra.mxu0 0.0
    %286 = vmatprep.subr.mxu0 0.0
    %287 = vmatpush1.msra.mxu0 0.0
    %288 = vmatprep.subr.mxu0 0.0
    %289 = vmatpush1.msra.mxu0 0.0
    %290 = vmatprep.subr.mxu0 0.0
    %291 = vmatpush1.msra.mxu0 0.0
    %292 = vmatprep.mubr.f32.mxu0 0.0
    %293 = vmatmul.mubr.f32.gmra.mrb[0].mxu0 %v226
    %v294 = vpop.f32.mrb[0].mxu0
    %v295 = vadd.f32 0.0, %v294
    %v296 = vpop.f32.mrb[0].mxu0
    %297 = vdwg.mxu0
    %v298 = vadd.f32 %v186, %v295
    %v299 = vmul.f32 %v298, 0.5
    %v300 = vtanh.pop %v299
    %v301 = vadd.f32 %v300, 1.0
    %v302 = vmul.f32 %v301, 0.5
    %v303 = vtanh.pop %v298
    %v304 = vmul.f32 %v302, 0.0
    %306 = vrot.lane.b32.xlu0 %v303, 32
    %v307 = vpop.permute.xlu0 %306
    %v309 = vmul.f32 %v302, %v307
    %311 = vrot.lane.b32.xlu0 %v309, 32
    %v312 = vpop.permute.xlu0 %311
    %v314 = vadd.f32 %v304, %v312
    %v315 = vtanh.pop %v314
    %317 = vrot.lane.b32.xlu0 %v315, 32
    %v318 = vpop.permute.xlu0 %317
    %v320 = vmul.f32 %v302, %v318
    %321 = vmatprep.subr.mxu0 0.0
    %322 = vmatpush1.msra.mxu0 %v66
    %323 = vmatprep.subr.mxu0 0.0
    %324 = vmatpush1.msra.mxu0 %v67
    %325 = vmatprep.subr.mxu0 0.0
    %326 = vmatpush1.msra.mxu0 %v68
    %327 = vmatprep.subr.mxu0 0.0
    %328 = vmatpush1.msra.mxu0 %v69
    %329 = vmatprep.subr.mxu0 0.0
    %330 = vmatpush1.msra.mxu0 0.0
    %331 = vmatprep.subr.mxu0 0.0
    %332 = vmatpush1.msra.mxu0 0.0
    %333 = vmatprep.subr.mxu0 0.0
    %334 = vmatpush1.msra.mxu0 0.0
    %335 = vmatprep.subr.mxu0 0.0
    %336 = vmatpush1.msra.mxu0 0.0
    %337 = vmatprep.subr.mxu0 0.0
    %338 = vmatpush1.msra.mxu0 0.0
    %339 = vmatprep.subr.mxu0 0.0
    %340 = vmatpush1.msra.mxu0 0.0
    %341 = vmatprep.subr.mxu0 0.0
    %342 = vmatpush1.msra.mxu0 0.0
    %343 = vmatprep.subr.mxu0 0.0
    %344 = vmatpush1.msra.mxu0 0.0
    %345 = vmatprep.subr.mxu0 0.0
    %346 = vmatpush1.msra.mxu0 0.0
    %347 = vmatprep.subr.mxu0 0.0
    %348 = vmatpush1.msra.mxu0 0.0
    %349 = vmatprep.subr.mxu0 0.0
    %350 = vmatpush1.msra.mxu0 0.0
    %351 = vmatprep.subr.mxu0 0.0
    %352 = vmatpush1.msra.mxu0 0.0
    %353 = vmatprep.subr.mxu0 0.0
    %354 = vmatpush1.msra.mxu0 0.0
    %355 = vmatprep.subr.mxu0 0.0
    %356 = vmatpush1.msra.mxu0 0.0
    %357 = vmatprep.subr.mxu0 0.0
    %358 = vmatpush1.msra.mxu0 0.0
    %359 = vmatprep.subr.mxu0 0.0
    %360 = vmatpush1.msra.mxu0 0.0
    %361 = vmatprep.subr.mxu0 0.0
    %362 = vmatpush1.msra.mxu0 0.0
    %363 = vmatprep.subr.mxu0 0.0
    %364 = vmatpush1.msra.mxu0 0.0
    %365 = vmatprep.subr.mxu0 0.0
    %366 = vmatpush1.msra.mxu0 0.0
    %367 = vmatprep.subr.mxu0 0.0
    %368 = vmatpush1.msra.mxu0 0.0
    %369 = vmatprep.subr.mxu0 0.0
    %370 = vmatpush1.msra.mxu0 0.0
    %371 = vmatprep.subr.mxu0 0.0
    %372 = vmatpush1.msra.mxu0 0.0
    %373 = vmatprep.subr.mxu0 0.0
    %374 = vmatpush1.msra.mxu0 0.0
    %375 = vmatprep.subr.mxu0 0.0
    %376 = vmatpush1.msra.mxu0 0.0
    %377 = vmatprep.subr.mxu0 0.0
    %378 = vmatpush1.msra.mxu0 0.0
    %379 = vmatprep.subr.mxu0 0.0
    %380 = vmatpush1.msra.mxu0 0.0
    %381 = vmatprep.subr.mxu0 0.0
    %382 = vmatpush1.msra.mxu0 0.0
    %383 = vmatprep.subr.mxu0 0.0
    %384 = vmatpush1.msra.mxu0 0.0
    %385 = vmatprep.mubr.f32.mxu0 0.0
    %386 = vmatmul.mubr.f32.gmra.mrb[0].mxu0 %v226
    %v387 = vpop.f32.mrb[0].mxu0
    %v388 = vadd.f32 0.0, %v387
    %v389 = vpop.f32.mrb[0].mxu0
    %390 = vdwg.mxu0
    %392 = vrot.lane.b32.xlu0 %v320, 64
    %v393 = vpop.permute.xlu0 %392
    %v394 = vsel %vm224, %v393, 0
    %396 = vmatprep.subr.mxu0 0.0
    %397 = vmatpush1.msra.mxu0 %v62
    %398 = vmatprep.subr.mxu0 0.0
    %399 = vmatpush1.msra.mxu0 %v63
    %400 = vmatprep.subr.mxu0 0.0
    %401 = vmatpush1.msra.mxu0 %v64
    %402 = vmatprep.subr.mxu0 0.0
    %403 = vmatpush1.msra.mxu0 %v65
    %404 = vmatprep.subr.mxu0 0.0
    %405 = vmatpush1.msra.mxu0 0.0
    %406 = vmatprep.subr.mxu0 0.0
    %407 = vmatpush1.msra.mxu0 0.0
    %408 = vmatprep.subr.mxu0 0.0
    %409 = vmatpush1.msra.mxu0 0.0
    %410 = vmatprep.subr.mxu0 0.0
    %411 = vmatpush1.msra.mxu0 0.0
    %412 = vmatprep.subr.mxu0 0.0
    %413 = vmatpush1.msra.mxu0 0.0
    %414 = vmatprep.subr.mxu0 0.0
    %415 = vmatpush1.msra.mxu0 0.0
    %416 = vmatprep.subr.mxu0 0.0
    %417 = vmatpush1.msra.mxu0 0.0
    %418 = vmatprep.subr.mxu0 0.0
    %419 = vmatpush1.msra.mxu0 0.0
    %420 = vmatprep.subr.mxu0 0.0
    %421 = vmatpush1.msra.mxu0 0.0
    %422 = vmatprep.subr.mxu0 0.0
    %423 = vmatpush1.msra.mxu0 0.0
    %424 = vmatprep.subr.mxu0 0.0
    %425 = vmatpush1.msra.mxu0 0.0
    %426 = vmatprep.subr.mxu0 0.0
    %427 = vmatpush1.msra.mxu0 0.0
    %428 = vmatprep.subr.mxu0 0.0
    %429 = vmatpush1.msra.mxu0 0.0
    %430 = vmatprep.subr.mxu0 0.0
    %431 = vmatpush1.msra.mxu0 0.0
    %432 = vmatprep.subr.mxu0 0.0
    %433 = vmatpush1.msra.mxu0 0.0
    %434 = vmatprep.subr.mxu0 0.0
    %435 = vmatpush1.msra.mxu0 0.0
    %436 = vmatprep.subr.mxu0 0.0
    %437 = vmatpush1.msra.mxu0 0.0
    %438 = vmatprep.subr.mxu0 0.0
    %439 = vmatpush1.msra.mxu0 0.0
    %440 = vmatprep.subr.mxu0 0.0
    %441 = vmatpush1.msra.mxu0 0.0
    %442 = vmatprep.subr.mxu0 0.0
    %443 = vmatpush1.msra.mxu0 0.0
    %444 = vmatprep.subr.mxu0 0.0
    %445 = vmatpush1.msra.mxu0 0.0
    %446 = vmatprep.subr.mxu0 0.0
    %447 = vmatpush1.msra.mxu0 0.0
    %448 = vmatprep.subr.mxu0 0.0
    %449 = vmatpush1.msra.mxu0 0.0
    %450 = vmatprep.subr.mxu0 0.0
    %451 = vmatpush1.msra.mxu0 0.0
    %452 = vmatprep.subr.mxu0 0.0
    %453 = vmatpush1.msra.mxu0 0.0
    %454 = vmatprep.subr.mxu0 0.0
    %455 = vmatpush1.msra.mxu0 0.0
    %456 = vmatprep.subr.mxu0 0.0
    %457 = vmatpush1.msra.mxu0 0.0
    %458 = vmatprep.subr.mxu0 0.0
    %459 = vmatpush1.msra.mxu0 0.0
    %460 = vmatprep.mubr.f32.mxu0 0.0
    %461 = vmatmul.mubr.f32.gmra.mrb[0].mxu0 %v394
    %v462 = vpop.f32.mrb[0].mxu0
    %v463 = vadd.f32 %v388, %v462
    %v464 = vpop.f32.mrb[0].mxu0
    %465 = vdwg.mxu0
    %v466 = vadd.f32 %v463, %v75
    %v467 = vmul.f32 %v466, 0.5
    %v468 = vtanh.pop %v467
    %v469 = vadd.f32 %v468, 1.0
    %v470 = vmul.f32 %v469, 0.5
    %v471 = vtanh.pop %v466
    %v472 = vmul.f32 %v470, 0.0
    %474 = vrot.lane.b32.xlu0 %v471, 32
    %v475 = vpop.permute.xlu0 %474
    %v477 = vmul.f32 %v470, %v475
    %479 = vrot.lane.b32.xlu0 %v477, 32
    %v480 = vpop.permute.xlu0 %479
    %v482 = vadd.f32 %v472, %v480
    %v483 = vtanh.pop %v482
    %485 = vrot.lane.b32.xlu0 %v483, 32
    %v486 = vpop.permute.xlu0 %485
    %v488 = vmul.f32 %v470, %v486
    %489 = vmatprep.subr.mxu0 0.0
    %490 = vmatpush1.msra.mxu0 %v58
    %491 = vmatprep.subr.mxu0 0.0
    %492 = vmatpush1.msra.mxu0 %v59
    %493 = vmatprep.subr.mxu0 0.0
    %494 = vmatpush1.msra.mxu0 %v60
    %495 = vmatprep.subr.mxu0 0.0
    %496 = vmatpush1.msra.mxu0 %v61
    %497 = vmatprep.subr.mxu0 0.0
    %498 = vmatpush1.msra.mxu0 0.0
    %499 = vmatprep.subr.mxu0 0.0
    %500 = vmatpush1.msra.mxu0 0.0
    %501 = vmatprep.subr.mxu0 0.0
    %502 = vmatpush1.msra.mxu0 0.0
    %503 = vmatprep.subr.mxu0 0.0
    %504 = vmatpush1.msra.mxu0 0.0
    %505 = vmatprep.subr.mxu0 0.0
    %506 = vmatpush1.msra.mxu0 0.0
    %507 = vmatprep.subr.mxu0 0.0
    %508 = vmatpush1.msra.mxu0 0.0
    %509 = vmatprep.subr.mxu0 0.0
    %510 = vmatpush1.msra.mxu0 0.0
    %511 = vmatprep.subr.mxu0 0.0
    %512 = vmatpush1.msra.mxu0 0.0
    %513 = vmatprep.subr.mxu0 0.0
    %514 = vmatpush1.msra.mxu0 0.0
    %515 = vmatprep.subr.mxu0 0.0
    %516 = vmatpush1.msra.mxu0 0.0
    %517 = vmatprep.subr.mxu0 0.0
    %518 = vmatpush1.msra.mxu0 0.0
    %519 = vmatprep.subr.mxu0 0.0
    %520 = vmatpush1.msra.mxu0 0.0
    %521 = vmatprep.subr.mxu0 0.0
    %522 = vmatpush1.msra.mxu0 0.0
    %523 = vmatprep.subr.mxu0 0.0
    %524 = vmatpush1.msra.mxu0 0.0
    %525 = vmatprep.subr.mxu0 0.0
    %526 = vmatpush1.msra.mxu0 0.0
    %527 = vmatprep.subr.mxu0 0.0
    %528 = vmatpush1.msra.mxu0 0.0
    %529 = vmatprep.subr.mxu0 0.0
    %530 = vmatpush1.msra.mxu0 0.0
    %531 = vmatprep.subr.mxu0 0.0
    %532 = vmatpush1.msra.mxu0 0.0
    %533 = vmatprep.subr.mxu0 0.0
    %534 = vmatpush1.msra.mxu0 0.0
    %535 = vmatprep.subr.mxu0 0.0
    %536 = vmatpush1.msra.mxu0 0.0
    %537 = vmatprep.subr.mxu0 0.0
    %538 = vmatpush1.msra.mxu0 0.0
    %539 = vmatprep.subr.mxu0 0.0
    %540 = vmatpush1.msra.mxu0 0.0
    %541 = vmatprep.subr.mxu0 0.0
    %542 = vmatpush1.msra.mxu0 0.0
    %543 = vmatprep.subr.mxu0 0.0
    %544 = vmatpush1.msra.mxu0 0.0
    %545 = vmatprep.subr.mxu0 0.0
    %546 = vmatpush1.msra.mxu0 0.0
    %547 = vmatprep.subr.mxu0 0.0
    %548 = vmatpush1.msra.mxu0 0.0
    %549 = vmatprep.subr.mxu0 0.0
    %550 = vmatpush1.msra.mxu0 0.0
    %551 = vmatprep.subr.mxu0 0.0
    %552 = vmatpush1.msra.mxu0 0.0
    %553 = vmatprep.mubr.f32.mxu0 0.0
    %554 = vmatmul.mubr.f32.gmra.mrb[0].mxu0 %v394
    %v555 = vpop.f32.mrb[0].mxu0
    %v556 = vadd.f32 0.0, %v555
    %v557 = vpop.f32.mrb[0].mxu0
    %558 = vdwg.mxu0
    %v559 = vadd.f32 %v191, %v556
    %v560 = vmul.f32 %v559, 0.5
    %v561 = vtanh.pop %v560
    %v562 = vadd.f32 %v561, 1.0
    %v563 = vmul.f32 %v562, 0.5
    %v564 = vtanh.pop %v559
    %v565 = vmul.f32 %v563, %v314
    %567 = vrot.lane.b32.xlu0 %v564, 32
    %v568 = vpop.permute.xlu0 %567
    %v570 = vmul.f32 %v563, %v568
    %572 = vrot.lane.b32.xlu0 %v570, 32
    %v573 = vpop.permute.xlu0 %572
    %v575 = vadd.f32 %v565, %v573
    %v576 = vtanh.pop %v575
    %578 = vrot.lane.b32.xlu0 %v576, 32
    %v579 = vpop.permute.xlu0 %578
    %v581 = vmul.f32 %v563, %v579
    %583 = vrot.lane.b32.xlu0 %v488, 64
    %v584 = vpop.permute.xlu0 %583
    %v585 = vsel %vm224, %v584, 0
    %587 = vmatprep.subr.mxu0 0.0
    %588 = vmatpush1.msra.mxu0 %v66
    %589 = vmatprep.subr.mxu0 0.0
    %590 = vmatpush1.msra.mxu0 %v67
    %591 = vmatprep.subr.mxu0 0.0
    %592 = vmatpush1.msra.mxu0 %v68
    %593 = vmatprep.subr.mxu0 0.0
    %594 = vmatpush1.msra.mxu0 %v69
    %595 = vmatprep.subr.mxu0 0.0
    %596 = vmatpush1.msra.mxu0 0.0
    %597 = vmatprep.subr.mxu0 0.0
    %598 = vmatpush1.msra.mxu0 0.0
    %599 = vmatprep.subr.mxu0 0.0
    %600 = vmatpush1.msra.mxu0 0.0
    %601 = vmatprep.subr.mxu0 0.0
    %602 = vmatpush1.msra.mxu0 0.0
    %603 = vmatprep.subr.mxu0 0.0
    %604 = vmatpush1.msra.mxu0 0.0
    %605 = vmatprep.subr.mxu0 0.0
    %606 = vmatpush1.msra.mxu0 0.0
    %607 = vmatprep.subr.mxu0 0.0
    %608 = vmatpush1.msra.mxu0 0.0
    %609 = vmatprep.subr.mxu0 0.0
    %610 = vmatpush1.msra.mxu0 0.0
    %611 = vmatprep.subr.mxu0 0.0
    %612 = vmatpush1.msra.mxu0 0.0
    %613 = vmatprep.subr.mxu0 0.0
    %614 = vmatpush1.msra.mxu0 0.0
    %615 = vmatprep.subr.mxu0 0.0
    %616 = vmatpush1.msra.mxu0 0.0
    %617 = vmatprep.subr.mxu0 0.0
    %618 = vmatpush1.msra.mxu0 0.0
    %619 = vmatprep.subr.mxu0 0.0
    %620 = vmatpush1.msra.mxu0 0.0
    %621 = vmatprep.subr.mxu0 0.0
    %622 = vmatpush1.msra.mxu0 0.0
    %623 = vmatprep.subr.mxu0 0.0
    %624 = vmatpush1.msra.mxu0 0.0
    %625 = vmatprep.subr.mxu0 0.0
    %626 = vmatpush1.msra.mxu0 0.0
    %627 = vmatprep.subr.mxu0 0.0
    %628 = vmatpush1.msra.mxu0 0.0
    %629 = vmatprep.subr.mxu0 0.0
    %630 = vmatpush1.msra.mxu0 0.0
    %631 = vmatprep.subr.mxu0 0.0
    %632 = vmatpush1.msra.mxu0 0.0
    %633 = vmatprep.subr.mxu0 0.0
    %634 = vmatpush1.msra.mxu0 0.0
    %635 = vmatprep.subr.mxu0 0.0
    %636 = vmatpush1.msra.mxu0 0.0
    %637 = vmatprep.subr.mxu0 0.0
    %638 = vmatpush1.msra.mxu0 0.0
    %639 = vmatprep.subr.mxu0 0.0
    %640 = vmatpush1.msra.mxu0 0.0
    %641 = vmatprep.subr.mxu0 0.0
    %642 = vmatpush1.msra.mxu0 0.0
    %643 = vmatprep.subr.mxu0 0.0
    %644 = vmatpush1.msra.mxu0 0.0
    %645 = vmatprep.subr.mxu0 0.0
    %646 = vmatpush1.msra.mxu0 0.0
    %647 = vmatprep.subr.mxu0 0.0
    %648 = vmatpush1.msra.mxu0 0.0
    %649 = vmatprep.subr.mxu0 0.0
    %650 = vmatpush1.msra.mxu0 0.0
    %651 = vmatprep.mubr.f32.mxu0 0.0
    %652 = vmatmul.mubr.f32.gmra.mrb[0].mxu0 %v585
    %v653 = vpop.f32.mrb[0].mxu0
    %v654 = vadd.f32 0.0, %v653
    %v655 = vpop.f32.mrb[0].mxu0
    %656 = vdwg.mxu0
    %658 = vrot.lane.b32.xlu0 %v581, 64
    %v659 = vpop.permute.xlu0 %658
    %v660 = vsel %vm224, %v659, 0
    %662 = vmatprep.subr.mxu0 0.0
    %663 = vmatpush1.msra.mxu0 %v62
    %664 = vmatprep.subr.mxu0 0.0
    %665 = vmatpush1.msra.mxu0 %v63
    %666 = vmatprep.subr.mxu0 0.0
    %667 = vmatpush1.msra.mxu0 %v64
    %668 = vmatprep.subr.mxu0 0.0
    %669 = vmatpush1.msra.mxu0 %v65
    %670 = vmatprep.subr.mxu0 0.0
    %671 = vmatpush1.msra.mxu0 0.0
    %672 = vmatprep.subr.mxu0 0.0
    %673 = vmatpush1.msra.mxu0 0.0
    %674 = vmatprep.subr.mxu0 0.0
    %675 = vmatpush1.msra.mxu0 0.0
    %676 = vmatprep.subr.mxu0 0.0
    %677 = vmatpush1.msra.mxu0 0.0
    %678 = vmatprep.subr.mxu0 0.0
    %679 = vmatpush1.msra.mxu0 0.0
    %680 = vmatprep.subr.mxu0 0.0
    %681 = vmatpush1.msra.mxu0 0.0
    %682 = vmatprep.subr.mxu0 0.0
    %683 = vmatpush1.msra.mxu0 0.0
    %684 = vmatprep.subr.mxu0 0.0
    %685 = vmatpush1.msra.mxu0 0.0
    %686 = vmatprep.subr.mxu0 0.0
    %687 = vmatpush1.msra.mxu0 0.0
    %688 = vmatprep.subr.mxu0 0.0
    %689 = vmatpush1.msra.mxu0 0.0
    %690 = vmatprep.subr.mxu0 0.0
    %691 = vmatpush1.msra.mxu0 0.0
    %692 = vmatprep.subr.mxu0 0.0
    %693 = vmatpush1.msra.mxu0 0.0
    %694 = vmatprep.subr.mxu0 0.0
    %695 = vmatpush1.msra.mxu0 0.0
    %696 = vmatprep.subr.mxu0 0.0
    %697 = vmatpush1.msra.mxu0 0.0
    %698 = vmatprep.subr.mxu0 0.0
    %699 = vmatpush1.msra.mxu0 0.0
    %700 = vmatprep.subr.mxu0 0.0
    %701 = vmatpush1.msra.mxu0 0.0
    %702 = vmatprep.subr.mxu0 0.0
    %703 = vmatpush1.msra.mxu0 0.0
    %704 = vmatprep.subr.mxu0 0.0
    %705 = vmatpush1.msra.mxu0 0.0
    %706 = vmatprep.subr.mxu0 0.0
    %707 = vmatpush1.msra.mxu0 0.0
    %708 = vmatprep.subr.mxu0 0.0
    %709 = vmatpush1.msra.mxu0 0.0
    %710 = vmatprep.subr.mxu0 0.0
    %711 = vmatpush1.msra.mxu0 0.0
    %712 = vmatprep.subr.mxu0 0.0
    %713 = vmatpush1.msra.mxu0 0.0
    %714 = vmatprep.subr.mxu0 0.0
    %715 = vmatpush1.msra.mxu0 0.0
    %716 = vmatprep.subr.mxu0 0.0
    %717 = vmatpush1.msra.mxu0 0.0
    %718 = vmatprep.subr.mxu0 0.0
    %719 = vmatpush1.msra.mxu0 0.0
    %720 = vmatprep.subr.mxu0 0.0
    %721 = vmatpush1.msra.mxu0 0.0
    %722 = vmatprep.subr.mxu0 0.0
    %723 = vmatpush1.msra.mxu0 0.0
    %724 = vmatprep.subr.mxu0 0.0
    %725 = vmatpush1.msra.mxu0 0.0
    %726 = vmatprep.mubr.f32.mxu0 0.0
    %727 = vmatmul.mubr.f32.gmra.mrb[0].mxu0 %v660
    %v728 = vpop.f32.mrb[0].mxu0
    %v729 = vadd.f32 %v654, %v728
    %v730 = vpop.f32.mrb[0].mxu0
    %731 = vdwg.mxu0
    %v732 = vadd.f32 %v729, %v75
    %v733 = vmul.f32 %v732, 0.5
    %v734 = vtanh.pop %v733
    %v735 = vadd.f32 %v734, 1.0
    %v736 = vmul.f32 %v735, 0.5
    %v737 = vtanh.pop %v732
    %v738 = vmul.f32 %v736, %v482
    %740 = vrot.lane.b32.xlu0 %v737, 32
    %v741 = vpop.permute.xlu0 %740
    %v743 = vmul.f32 %v736, %v741
    %745 = vrot.lane.b32.xlu0 %v743, 32
    %v746 = vpop.permute.xlu0 %745
    %v748 = vadd.f32 %v738, %v746
    %v749 = vtanh.pop %v748
    %751 = vrot.lane.b32.xlu0 %v749, 32
    %v752 = vpop.permute.xlu0 %751
    %v754 = vmul.f32 %v736, %v752
    %755 = vmatprep.subr.mxu0 0.0
    %756 = vmatpush1.msra.mxu0 %v58
    %757 = vmatprep.subr.mxu0 0.0
    %758 = vmatpush1.msra.mxu0 %v59
    %759 = vmatprep.subr.mxu0 0.0
    %760 = vmatpush1.msra.mxu0 %v60
    %761 = vmatprep.subr.mxu0 0.0
    %762 = vmatpush1.msra.mxu0 %v61
    %763 = vmatprep.subr.mxu0 0.0
    %764 = vmatpush1.msra.mxu0 0.0
    %765 = vmatprep.subr.mxu0 0.0
    %766 = vmatpush1.msra.mxu0 0.0
    %767 = vmatprep.subr.mxu0 0.0
    %768 = vmatpush1.msra.mxu0 0.0
    %769 = vmatprep.subr.mxu0 0.0
    %770 = vmatpush1.msra.mxu0 0.0
    %771 = vmatprep.subr.mxu0 0.0
    %772 = vmatpush1.msra.mxu0 0.0
    %773 = vmatprep.subr.mxu0 0.0
    %774 = vmatpush1.msra.mxu0 0.0
    %775 = vmatprep.subr.mxu0 0.0
    %776 = vmatpush1.msra.mxu0 0.0
    %777 = vmatprep.subr.mxu0 0.0
    %778 = vmatpush1.msra.mxu0 0.0
    %779 = vmatprep.subr.mxu0 0.0
    %780 = vmatpush1.msra.mxu0 0.0
    %781 = vmatprep.subr.mxu0 0.0
    %782 = vmatpush1.msra.mxu0 0.0
    %783 = vmatprep.subr.mxu0 0.0
    %784 = vmatpush1.msra.mxu0 0.0
    %785 = vmatprep.subr.mxu0 0.0
    %786 = vmatpush1.msra.mxu0 0.0
    %787 = vmatprep.subr.mxu0 0.0
    %788 = vmatpush1.msra.mxu0 0.0
    %789 = vmatprep.subr.mxu0 0.0
    %790 = vmatpush1.msra.mxu0 0.0
    %791 = vmatprep.subr.mxu0 0.0
    %792 = vmatpush1.msra.mxu0 0.0
    %793 = vmatprep.subr.mxu0 0.0
    %794 = vmatpush1.msra.mxu0 0.0
    %795 = vmatprep.subr.mxu0 0.0
    %796 = vmatpush1.msra.mxu0 0.0
    %797 = vmatprep.subr.mxu0 0.0
    %798 = vmatpush1.msra.mxu0 0.0
    %799 = vmatprep.subr.mxu0 0.0
    %800 = vmatpush1.msra.mxu0 0.0
    %801 = vmatprep.subr.mxu0 0.0
    %802 = vmatpush1.msra.mxu0 0.0
    %803 = vmatprep.subr.mxu0 0.0
    %804 = vmatpush1.msra.mxu0 0.0
    %805 = vmatprep.subr.mxu0 0.0
    %806 = vmatpush1.msra.mxu0 0.0
    %807 = vmatprep.subr.mxu0 0.0
    %808 = vmatpush1.msra.mxu0 0.0
    %809 = vmatprep.subr.mxu0 0.0
    %810 = vmatpush1.msra.mxu0 0.0
    %811 = vmatprep.subr.mxu0 0.0
    %812 = vmatpush1.msra.mxu0 0.0
    %813 = vmatprep.subr.mxu0 0.0
    %814 = vmatpush1.msra.mxu0 0.0
    %815 = vmatprep.subr.mxu0 0.0
    %816 = vmatpush1.msra.mxu0 0.0
    %817 = vmatprep.subr.mxu0 0.0
    %818 = vmatpush1.msra.mxu0 0.0
    %819 = vmatprep.mubr.f32.mxu0 0.0
    %820 = vmatmul.mubr.f32.gmra.mrb[0].mxu0 %v660
    %v821 = vpop.f32.mrb[0].mxu0
    %v822 = vadd.f32 0.0, %v821
    %v823 = vpop.f32.mrb[0].mxu0
    %824 = vdwg.mxu0
    %v825 = vadd.f32 %v196, %v822
    %v826 = vmul.f32 %v825, 0.5
    %v827 = vtanh.pop %v826
    %v828 = vadd.f32 %v827, 1.0
    %v829 = vmul.f32 %v828, 0.5
    %v830 = vtanh.pop %v825
    %v831 = vmul.f32 %v829, %v575
    %833 = vrot.lane.b32.xlu0 %v830, 32
    %v834 = vpop.permute.xlu0 %833
    %v836 = vmul.f32 %v829, %v834
    %838 = vrot.lane.b32.xlu0 %v836, 32
    %v839 = vpop.permute.xlu0 %838
    %v841 = vadd.f32 %v831, %v839
    %v842 = vtanh.pop %v841
    %844 = vrot.lane.b32.xlu0 %v842, 32
    %v845 = vpop.permute.xlu0 %844
    %v847 = vmul.f32 %v829, %v845
    %849 = vrot.lane.b32.xlu0 %v754, 64
    %v850 = vpop.permute.xlu0 %849
    %v851 = vsel %vm224, %v850, 0
    %853 = vmatprep.subr.mxu0 0.0
    %854 = vmatpush1.msra.mxu0 %v66
    %855 = vmatprep.subr.mxu0 0.0
    %856 = vmatpush1.msra.mxu0 %v67
    %857 = vmatprep.subr.mxu0 0.0
    %858 = vmatpush1.msra.mxu0 %v68
    %859 = vmatprep.subr.mxu0 0.0
    %860 = vmatpush1.msra.mxu0 %v69
    %861 = vmatprep.subr.mxu0 0.0
    %862 = vmatpush1.msra.mxu0 0.0
    %863 = vmatprep.subr.mxu0 0.0
    %864 = vmatpush1.msra.mxu0 0.0
    %865 = vmatprep.subr.mxu0 0.0
    %866 = vmatpush1.msra.mxu0 0.0
    %867 = vmatprep.subr.mxu0 0.0
    %868 = vmatpush1.msra.mxu0 0.0
    %869 = vmatprep.subr.mxu0 0.0
    %870 = vmatpush1.msra.mxu0 0.0
    %871 = vmatprep.subr.mxu0 0.0
    %872 = vmatpush1.msra.mxu0 0.0
    %873 = vmatprep.subr.mxu0 0.0
    %874 = vmatpush1.msra.mxu0 0.0
    %875 = vmatprep.subr.mxu0 0.0
    %876 = vmatpush1.msra.mxu0 0.0
    %877 = vmatprep.subr.mxu0 0.0
    %878 = vmatpush1.msra.mxu0 0.0
    %879 = vmatprep.subr.mxu0 0.0
    %880 = vmatpush1.msra.mxu0 0.0
    %881 = vmatprep.subr.mxu0 0.0
    %882 = vmatpush1.msra.mxu0 0.0
    %883 = vmatprep.subr.mxu0 0.0
    %884 = vmatpush1.msra.mxu0 0.0
    %885 = vmatprep.subr.mxu0 0.0
    %886 = vmatpush1.msra.mxu0 0.0
    %887 = vmatprep.subr.mxu0 0.0
    %888 = vmatpush1.msra.mxu0 0.0
    %889 = vmatprep.subr.mxu0 0.0
    %890 = vmatpush1.msra.mxu0 0.0
    %891 = vmatprep.subr.mxu0 0.0
    %892 = vmatpush1.msra.mxu0 0.0
    %893 = vmatprep.subr.mxu0 0.0
    %894 = vmatpush1.msra.mxu0 0.0
    %895 = vmatprep.subr.mxu0 0.0
    %896 = vmatpush1.msra.mxu0 0.0
    %897 = vmatprep.subr.mxu0 0.0
    %898 = vmatpush1.msra.mxu0 0.0
    %899 = vmatprep.subr.mxu0 0.0
    %900 = vmatpush1.msra.mxu0 0.0
    %901 = vmatprep.subr.mxu0 0.0
    %902 = vmatpush1.msra.mxu0 0.0
    %903 = vmatprep.subr.mxu0 0.0
    %904 = vmatpush1.msra.mxu0 0.0
    %905 = vmatprep.subr.mxu0 0.0
    %906 = vmatpush1.msra.mxu0 0.0
    %907 = vmatprep.subr.mxu0 0.0
    %908 = vmatpush1.msra.mxu0 0.0
    %909 = vmatprep.subr.mxu0 0.0
    %910 = vmatpush1.msra.mxu0 0.0
    %911 = vmatprep.subr.mxu0 0.0
    %912 = vmatpush1.msra.mxu0 0.0
    %913 = vmatprep.subr.mxu0 0.0
    %914 = vmatpush1.msra.mxu0 0.0
    %915 = vmatprep.subr.mxu0 0.0
    %916 = vmatpush1.msra.mxu0 0.0
    %917 = vmatprep.mubr.f32.mxu0 0.0
    %918 = vmatmul.mubr.f32.gmra.mrb[0].mxu0 %v851
    %v919 = vpop.f32.mrb[0].mxu0
    %v920 = vadd.f32 0.0, %v919
    %v921 = vpop.f32.mrb[0].mxu0
    %922 = vdwg.mxu0
    %924 = vrot.lane.b32.xlu0 %v847, 64
    %v925 = vpop.permute.xlu0 %924
    %v926 = vsel %vm224, %v925, 0
    %928 = vmatprep.subr.mxu0 0.0
    %929 = vmatpush1.msra.mxu0 %v62
    %930 = vmatprep.subr.mxu0 0.0
    %931 = vmatpush1.msra.mxu0 %v63
    %932 = vmatprep.subr.mxu0 0.0
    %933 = vmatpush1.msra.mxu0 %v64
    %934 = vmatprep.subr.mxu0 0.0
    %935 = vmatpush1.msra.mxu0 %v65
    %936 = vmatprep.subr.mxu0 0.0
    %937 = vmatpush1.msra.mxu0 0.0
    %938 = vmatprep.subr.mxu0 0.0
    %939 = vmatpush1.msra.mxu0 0.0
    %940 = vmatprep.subr.mxu0 0.0
    %941 = vmatpush1.msra.mxu0 0.0
    %942 = vmatprep.subr.mxu0 0.0
    %943 = vmatpush1.msra.mxu0 0.0
    %944 = vmatprep.subr.mxu0 0.0
    %945 = vmatpush1.msra.mxu0 0.0
    %946 = vmatprep.subr.mxu0 0.0
    %947 = vmatpush1.msra.mxu0 0.0
    %948 = vmatprep.subr.mxu0 0.0
    %949 = vmatpush1.msra.mxu0 0.0
    %950 = vmatprep.subr.mxu0 0.0
    %951 = vmatpush1.msra.mxu0 0.0
    %952 = vmatprep.subr.mxu0 0.0
    %953 = vmatpush1.msra.mxu0 0.0
    %954 = vmatprep.subr.mxu0 0.0
    %955 = vmatpush1.msra.mxu0 0.0
    %956 = vmatprep.subr.mxu0 0.0
    %957 = vmatpush1.msra.mxu0 0.0
    %958 = vmatprep.subr.mxu0 0.0
    %959 = vmatpush1.msra.mxu0 0.0
    %960 = vmatprep.subr.mxu0 0.0
    %961 = vmatpush1.msra.mxu0 0.0
    %962 = vmatprep.subr.mxu0 0.0
    %963 = vmatpush1.msra.mxu0 0.0
    %964 = vmatprep.subr.mxu0 0.0
    %965 = vmatpush1.msra.mxu0 0.0
    %966 = vmatprep.subr.mxu0 0.0
    %967 = vmatpush1.msra.mxu0 0.0
    %968 = vmatprep.subr.mxu0 0.0
    %969 = vmatpush1.msra.mxu0 0.0
    %970 = vmatprep.subr.mxu0 0.0
    %971 = vmatpush1.msra.mxu0 0.0
    %972 = vmatprep.subr.mxu0 0.0
    %973 = vmatpush1.msra.mxu0 0.0
    %974 = vmatprep.subr.mxu0 0.0
    %975 = vmatpush1.msra.mxu0 0.0
    %976 = vmatprep.subr.mxu0 0.0
    %977 = vmatpush1.msra.mxu0 0.0
    %978 = vmatprep.subr.mxu0 0.0
    %979 = vmatpush1.msra.mxu0 0.0
    %980 = vmatprep.subr.mxu0 0.0
    %981 = vmatpush1.msra.mxu0 0.0
    %982 = vmatprep.subr.mxu0 0.0
    %983 = vmatpush1.msra.mxu0 0.0
    %984 = vmatprep.subr.mxu0 0.0
    %985 = vmatpush1.msra.mxu0 0.0
    %986 = vmatprep.subr.mxu0 0.0
    %987 = vmatpush1.msra.mxu0 0.0
    %988 = vmatprep.subr.mxu0 0.0
    %989 = vmatpush1.msra.mxu0 0.0
    %990 = vmatprep.subr.mxu0 0.0
    %991 = vmatpush1.msra.mxu0 0.0
    %992 = vmatprep.mubr.f32.mxu0 0.0
    %993 = vmatmul.mubr.f32.gmra.mrb[0].mxu0 %v926
    %v994 = vpop.f32.mrb[0].mxu0
    %v995 = vadd.f32 %v920, %v994
    %v996 = vpop.f32.mrb[0].mxu0
    %997 = vdwg.mxu0
    %v998 = vadd.f32 %v995, %v75
    %v999 = vmul.f32 %v998, 0.5
    %v1000 = vtanh.pop %v999
    %v1001 = vadd.f32 %v1000, 1.0
    %v1002 = vmul.f32 %v1001, 0.5
    %v1003 = vtanh.pop %v998
    %v1004 = vmul.f32 %v1002, %v748
    %1006 = vrot.lane.b32.xlu0 %v1003, 32
    %v1007 = vpop.permute.xlu0 %1006
    %v1009 = vmul.f32 %v1002, %v1007
    %1011 = vrot.lane.b32.xlu0 %v1009, 32
    %v1012 = vpop.permute.xlu0 %1011
    %v1014 = vadd.f32 %v1004, %v1012
    %v1015 = vtanh.pop %v1014
    %1017 = vrot.lane.b32.xlu0 %v1015, 32
    %v1018 = vpop.permute.xlu0 %1017
    %v1020 = vmul.f32 %v1002, %v1018
    %1021 = vmatprep.subr.mxu0 0.0
    %1022 = vmatpush1.msra.mxu0 %v58
    %1023 = vmatprep.subr.mxu0 0.0
    %1024 = vmatpush1.msra.mxu0 %v59
    %1025 = vmatprep.subr.mxu0 0.0
    %1026 = vmatpush1.msra.mxu0 %v60
    %1027 = vmatprep.subr.mxu0 0.0
    %1028 = vmatpush1.msra.mxu0 %v61
    %1029 = vmatprep.subr.mxu0 0.0
    %1030 = vmatpush1.msra.mxu0 0.0
    %1031 = vmatprep.subr.mxu0 0.0
    %1032 = vmatpush1.msra.mxu0 0.0
    %1033 = vmatprep.subr.mxu0 0.0
    %1034 = vmatpush1.msra.mxu0 0.0
    %1035 = vmatprep.subr.mxu0 0.0
    %1036 = vmatpush1.msra.mxu0 0.0
    %1037 = vmatprep.subr.mxu0 0.0
    %1038 = vmatpush1.msra.mxu0 0.0
    %1039 = vmatprep.subr.mxu0 0.0
    %1040 = vmatpush1.msra.mxu0 0.0
    %1041 = vmatprep.subr.mxu0 0.0
    %1042 = vmatpush1.msra.mxu0 0.0
    %1043 = vmatprep.subr.mxu0 0.0
    %1044 = vmatpush1.msra.mxu0 0.0
    %1045 = vmatprep.subr.mxu0 0.0
    %1046 = vmatpush1.msra.mxu0 0.0
    %1047 = vmatprep.subr.mxu0 0.0
    %1048 = vmatpush1.msra.mxu0 0.0
    %1049 = vmatprep.subr.mxu0 0.0
    %1050 = vmatpush1.msra.mxu0 0.0
    %1051 = vmatprep.subr.mxu0 0.0
    %1052 = vmatpush1.msra.mxu0 0.0
    %1053 = vmatprep.subr.mxu0 0.0
    %1054 = vmatpush1.msra.mxu0 0.0
    %1055 = vmatprep.subr.mxu0 0.0
    %1056 = vmatpush1.msra.mxu0 0.0
    %1057 = vmatprep.subr.mxu0 0.0
    %1058 = vmatpush1.msra.mxu0 0.0
    %1059 = vmatprep.subr.mxu0 0.0
    %1060 = vmatpush1.msra.mxu0 0.0
    %1061 = vmatprep.subr.mxu0 0.0
    %1062 = vmatpush1.msra.mxu0 0.0
    %1063 = vmatprep.subr.mxu0 0.0
    %1064 = vmatpush1.msra.mxu0 0.0
    %1065 = vmatprep.subr.mxu0 0.0
    %1066 = vmatpush1.msra.mxu0 0.0
    %1067 = vmatprep.subr.mxu0 0.0
    %1068 = vmatpush1.msra.mxu0 0.0
    %1069 = vmatprep.subr.mxu0 0.0
    %1070 = vmatpush1.msra.mxu0 0.0
    %1071 = vmatprep.subr.mxu0 0.0
    %1072 = vmatpush1.msra.mxu0 0.0
    %1073 = vmatprep.subr.mxu0 0.0
    %1074 = vmatpush1.msra.mxu0 0.0
    %1075 = vmatprep.subr.mxu0 0.0
    %1076 = vmatpush1.msra.mxu0 0.0
    %1077 = vmatprep.subr.mxu0 0.0
    %1078 = vmatpush1.msra.mxu0 0.0
    %1079 = vmatprep.subr.mxu0 0.0
    %1080 = vmatpush1.msra.mxu0 0.0
    %1081 = vmatprep.subr.mxu0 0.0
    %1082 = vmatpush1.msra.mxu0 0.0
    %1083 = vmatprep.subr.mxu0 0.0
    %1084 = vmatpush1.msra.mxu0 0.0
    %1085 = vmatprep.mubr.f32.mxu0 0.0
    %1086 = vmatmul.mubr.f32.gmra.mrb[0].mxu0 %v926
    %v1087 = vpop.f32.mrb[0].mxu0
    %v1088 = vadd.f32 0.0, %v1087
    %v1089 = vpop.f32.mrb[0].mxu0
    %1090 = vdwg.mxu0
    %v1091 = vadd.f32 %v201, %v1088
    %v1092 = vmul.f32 %v1091, 0.5
    %v1093 = vtanh.pop %v1092
    %v1094 = vadd.f32 %v1093, 1.0
    %v1095 = vmul.f32 %v1094, 0.5
    %v1096 = vtanh.pop %v1091
    %v1097 = vmul.f32 %v1095, %v841
    %1099 = vrot.lane.b32.xlu0 %v1096, 32
    %v1100 = vpop.permute.xlu0 %1099
    %v1102 = vmul.f32 %v1095, %v1100
    %1104 = vrot.lane.b32.xlu0 %v1102, 32
    %v1105 = vpop.permute.xlu0 %1104
    %v1107 = vadd.f32 %v1097, %v1105
    %v1108 = vtanh.pop %v1107
    %1110 = vrot.lane.b32.xlu0 %v1108, 32
    %v1111 = vpop.permute.xlu0 %1110
    %v1113 = vmul.f32 %v1095, %v1111
    %1115 = vrot.lane.b32.xlu0 %v1020, 64
    %v1116 = vpop.permute.xlu0 %1115
    %v1117 = vsel %vm224, %v1116, 0
    %1119 = vmatprep.subr.mxu0 0.0
    %1120 = vmatpush1.msra.mxu0 %v66
    %1121 = vmatprep.subr.mxu0 0.0
    %1122 = vmatpush1.msra.mxu0 %v67
    %1123 = vmatprep.subr.mxu0 0.0
    %1124 = vmatpush1.msra.mxu0 %v68
    %1125 = vmatprep.subr.mxu0 0.0
    %1126 = vmatpush1.msra.mxu0 %v69
    %1127 = vmatprep.subr.mxu0 0.0
    %1128 = vmatpush1.msra.mxu0 0.0
    %1129 = vmatprep.subr.mxu0 0.0
    %1130 = vmatpush1.msra.mxu0 0.0
    %1131 = vmatprep.subr.mxu0 0.0
    %1132 = vmatpush1.msra.mxu0 0.0
    %1133 = vmatprep.subr.mxu0 0.0
    %1134 = vmatpush1.msra.mxu0 0.0
    %1135 = vmatprep.subr.mxu0 0.0
    %1136 = vmatpush1.msra.mxu0 0.0
    %1137 = vmatprep.subr.mxu0 0.0
    %1138 = vmatpush1.msra.mxu0 0.0
    %1139 = vmatprep.subr.mxu0 0.0
    %1140 = vmatpush1.msra.mxu0 0.0
    %1141 = vmatprep.subr.mxu0 0.0
    %1142 = vmatpush1.msra.mxu0 0.0
    %1143 = vmatprep.subr.mxu0 0.0
    %1144 = vmatpush1.msra.mxu0 0.0
    %1145 = vmatprep.subr.mxu0 0.0
    %1146 = vmatpush1.msra.mxu0 0.0
    %1147 = vmatprep.subr.mxu0 0.0
    %1148 = vmatpush1.msra.mxu0 0.0
    %1149 = vmatprep.subr.mxu0 0.0
    %1150 = vmatpush1.msra.mxu0 0.0
    %1151 = vmatprep.subr.mxu0 0.0
    %1152 = vmatpush1.msra.mxu0 0.0
    %1153 = vmatprep.subr.mxu0 0.0
    %1154 = vmatpush1.msra.mxu0 0.0
    %1155 = vmatprep.subr.mxu0 0.0
    %1156 = vmatpush1.msra.mxu0 0.0
    %1157 = vmatprep.subr.mxu0 0.0
    %1158 = vmatpush1.msra.mxu0 0.0
    %1159 = vmatprep.subr.mxu0 0.0
    %1160 = vmatpush1.msra.mxu0 0.0
    %1161 = vmatprep.subr.mxu0 0.0
    %1162 = vmatpush1.msra.mxu0 0.0
    %1163 = vmatprep.subr.mxu0 0.0
    %1164 = vmatpush1.msra.mxu0 0.0
    %1165 = vmatprep.subr.mxu0 0.0
    %1166 = vmatpush1.msra.mxu0 0.0
    %1167 = vmatprep.subr.mxu0 0.0
    %1168 = vmatpush1.msra.mxu0 0.0
    %1169 = vmatprep.subr.mxu0 0.0
    %1170 = vmatpush1.msra.mxu0 0.0
    %1171 = vmatprep.subr.mxu0 0.0
    %1172 = vmatpush1.msra.mxu0 0.0
    %1173 = vmatprep.subr.mxu0 0.0
    %1174 = vmatpush1.msra.mxu0 0.0
    %1175 = vmatprep.subr.mxu0 0.0
    %1176 = vmatpush1.msra.mxu0 0.0
    %1177 = vmatprep.subr.mxu0 0.0
    %1178 = vmatpush1.msra.mxu0 0.0
    %1179 = vmatprep.subr.mxu0 0.0
    %1180 = vmatpush1.msra.mxu0 0.0
    %1181 = vmatprep.subr.mxu0 0.0
    %1182 = vmatpush1.msra.mxu0 0.0
    %1183 = vmatprep.mubr.f32.mxu0 0.0
    %1184 = vmatmul.mubr.f32.gmra.mrb[0].mxu0 %v1117
    %v1185 = vpop.f32.mrb[0].mxu0
    %v1186 = vadd.f32 0.0, %v1185
    %v1187 = vpop.f32.mrb[0].mxu0
    %1188 = vdwg.mxu0
    %1190 = vrot.lane.b32.xlu0 %v1113, 64
    %v1191 = vpop.permute.xlu0 %1190
    %v1192 = vsel %vm224, %v1191, 0
    %1194 = vmatprep.subr.mxu0 0.0
    %1195 = vmatpush1.msra.mxu0 %v62
    %1196 = vmatprep.subr.mxu0 0.0
    %1197 = vmatpush1.msra.mxu0 %v63
    %1198 = vmatprep.subr.mxu0 0.0
    %1199 = vmatpush1.msra.mxu0 %v64
    %1200 = vmatprep.subr.mxu0 0.0
    %1201 = vmatpush1.msra.mxu0 %v65
    %1202 = vmatprep.subr.mxu0 0.0
    %1203 = vmatpush1.msra.mxu0 0.0
    %1204 = vmatprep.subr.mxu0 0.0
    %1205 = vmatpush1.msra.mxu0 0.0
    %1206 = vmatprep.subr.mxu0 0.0
    %1207 = vmatpush1.msra.mxu0 0.0
    %1208 = vmatprep.subr.mxu0 0.0
    %1209 = vmatpush1.msra.mxu0 0.0
    %1210 = vmatprep.subr.mxu0 0.0
    %1211 = vmatpush1.msra.mxu0 0.0
    %1212 = vmatprep.subr.mxu0 0.0
    %1213 = vmatpush1.msra.mxu0 0.0
    %1214 = vmatprep.subr.mxu0 0.0
    %1215 = vmatpush1.msra.mxu0 0.0
    %1216 = vmatprep.subr.mxu0 0.0
    %1217 = vmatpush1.msra.mxu0 0.0
    %1218 = vmatprep.subr.mxu0 0.0
    %1219 = vmatpush1.msra.mxu0 0.0
    %1220 = vmatprep.subr.mxu0 0.0
    %1221 = vmatpush1.msra.mxu0 0.0
    %1222 = vmatprep.subr.mxu0 0.0
    %1223 = vmatpush1.msra.mxu0 0.0
    %1224 = vmatprep.subr.mxu0 0.0
    %1225 = vmatpush1.msra.mxu0 0.0
    %1226 = vmatprep.subr.mxu0 0.0
    %1227 = vmatpush1.msra.mxu0 0.0
    %1228 = vmatprep.subr.mxu0 0.0
    %1229 = vmatpush1.msra.mxu0 0.0
    %1230 = vmatprep.subr.mxu0 0.0
    %1231 = vmatpush1.msra.mxu0 0.0
    %1232 = vmatprep.subr.mxu0 0.0
    %1233 = vmatpush1.msra.mxu0 0.0
    %1234 = vmatprep.subr.mxu0 0.0
    %1235 = vmatpush1.msra.mxu0 0.0
    %1236 = vmatprep.subr.mxu0 0.0
    %1237 = vmatpush1.msra.mxu0 0.0
    %1238 = vmatprep.subr.mxu0 0.0
    %1239 = vmatpush1.msra.mxu0 0.0
    %1240 = vmatprep.subr.mxu0 0.0
    %1241 = vmatpush1.msra.mxu0 0.0
    %1242 = vmatprep.subr.mxu0 0.0
    %1243 = vmatpush1.msra.mxu0 0.0
    %1244 = vmatprep.subr.mxu0 0.0
    %1245 = vmatpush1.msra.mxu0 0.0
    %1246 = vmatprep.subr.mxu0 0.0
    %1247 = vmatpush1.msra.mxu0 0.0
    %1248 = vmatprep.subr.mxu0 0.0
    %1249 = vmatpush1.msra.mxu0 0.0
    %1250 = vmatprep.subr.mxu0 0.0
    %1251 = vmatpush1.msra.mxu0 0.0
    %1252 = vmatprep.subr.mxu0 0.0
    %1253 = vmatpush1.msra.mxu0 0.0
    %1254 = vmatprep.subr.mxu0 0.0
    %1255 = vmatpush1.msra.mxu0 0.0
    %1256 = vmatprep.subr.mxu0 0.0
    %1257 = vmatpush1.msra.mxu0 0.0
    %1258 = vmatprep.mubr.f32.mxu0 0.0
    %1259 = vmatmul.mubr.f32.gmra.mrb[0].mxu0 %v1192
    %v1260 = vpop.f32.mrb[0].mxu0
    %v1261 = vadd.f32 %v1186, %v1260
    %v1262 = vpop.f32.mrb[0].mxu0
    %1263 = vdwg.mxu0
    %v1264 = vadd.f32 %v1261, %v75
    %v1265 = vmul.f32 %v1264, 0.5
    %v1266 = vtanh.pop %v1265
    %v1267 = vadd.f32 %v1266, 1.0
    %v1268 = vmul.f32 %v1267, 0.5
    %v1269 = vtanh.pop %v1264
    %v1270 = vmul.f32 %v1268, %v1014
    %1272 = vrot.lane.b32.xlu0 %v1269, 32
    %v1273 = vpop.permute.xlu0 %1272
    %v1275 = vmul.f32 %v1268, %v1273
    %1277 = vrot.lane.b32.xlu0 %v1275, 32
    %v1278 = vpop.permute.xlu0 %1277
    %v1280 = vadd.f32 %v1270, %v1278
    %v1281 = vtanh.pop %v1280
    %1283 = vrot.lane.b32.xlu0 %v1281, 32
    %v1284 = vpop.permute.xlu0 %1283
    %v1286 = vmul.f32 %v1268, %v1284
    %1287 = vmatprep.subr.mxu0 0.0
    %1288 = vmatpush1.msra.mxu0 %v58
    %1289 = vmatprep.subr.mxu0 0.0
    %1290 = vmatpush1.msra.mxu0 %v59
    %1291 = vmatprep.subr.mxu0 0.0
    %1292 = vmatpush1.msra.mxu0 %v60
    %1293 = vmatprep.subr.mxu0 0.0
    %1294 = vmatpush1.msra.mxu0 %v61
    %1295 = vmatprep.subr.mxu0 0.0
    %1296 = vmatpush1.msra.mxu0 0.0
    %1297 = vmatprep.subr.mxu0 0.0
    %1298 = vmatpush1.msra.mxu0 0.0
    %1299 = vmatprep.subr.mxu0 0.0
    %1300 = vmatpush1.msra.mxu0 0.0
    %1301 = vmatprep.subr.mxu0 0.0
    %1302 = vmatpush1.msra.mxu0 0.0
    %1303 = vmatprep.subr.mxu0 0.0
    %1304 = vmatpush1.msra.mxu0 0.0
    %1305 = vmatprep.subr.mxu0 0.0
    %1306 = vmatpush1.msra.mxu0 0.0
    %1307 = vmatprep.subr.mxu0 0.0
    %1308 = vmatpush1.msra.mxu0 0.0
    %1309 = vmatprep.subr.mxu0 0.0
    %1310 = vmatpush1.msra.mxu0 0.0
    %1311 = vmatprep.subr.mxu0 0.0
    %1312 = vmatpush1.msra.mxu0 0.0
    %1313 = vmatprep.subr.mxu0 0.0
    %1314 = vmatpush1.msra.mxu0 0.0
    %1315 = vmatprep.subr.mxu0 0.0
    %1316 = vmatpush1.msra.mxu0 0.0
    %1317 = vmatprep.subr.mxu0 0.0
    %1318 = vmatpush1.msra.mxu0 0.0
    %1319 = vmatprep.subr.mxu0 0.0
    %1320 = vmatpush1.msra.mxu0 0.0
    %1321 = vmatprep.subr.mxu0 0.0
    %1322 = vmatpush1.msra.mxu0 0.0
    %1323 = vmatprep.subr.mxu0 0.0
    %1324 = vmatpush1.msra.mxu0 0.0
    %1325 = vmatprep.subr.mxu0 0.0
    %1326 = vmatpush1.msra.mxu0 0.0
    %1327 = vmatprep.subr.mxu0 0.0
    %1328 = vmatpush1.msra.mxu0 0.0
    %1329 = vmatprep.subr.mxu0 0.0
    %1330 = vmatpush1.msra.mxu0 0.0
    %1331 = vmatprep.subr.mxu0 0.0
    %1332 = vmatpush1.msra.mxu0 0.0
    %1333 = vmatprep.subr.mxu0 0.0
    %1334 = vmatpush1.msra.mxu0 0.0
    %1335 = vmatprep.subr.mxu0 0.0
    %1336 = vmatpush1.msra.mxu0 0.0
    %1337 = vmatprep.subr.mxu0 0.0
    %1338 = vmatpush1.msra.mxu0 0.0
    %1339 = vmatprep.subr.mxu0 0.0
    %1340 = vmatpush1.msra.mxu0 0.0
    %1341 = vmatprep.subr.mxu0 0.0
    %1342 = vmatpush1.msra.mxu0 0.0
    %1343 = vmatprep.subr.mxu0 0.0
    %1344 = vmatpush1.msra.mxu0 0.0
    %1345 = vmatprep.subr.mxu0 0.0
    %1346 = vmatpush1.msra.mxu0 0.0
    %1347 = vmatprep.subr.mxu0 0.0
    %1348 = vmatpush1.msra.mxu0 0.0
    %1349 = vmatprep.subr.mxu0 0.0
    %1350 = vmatpush1.msra.mxu0 0.0
    %1351 = vmatprep.mubr.f32.mxu0 0.0
    %1352 = vmatmul.mubr.f32.gmra.mrb[0].mxu0 %v1192
    %v1353 = vpop.f32.mrb[0].mxu0
    %v1354 = vadd.f32 0.0, %v1353
    %v1355 = vpop.f32.mrb[0].mxu0
    %1356 = vdwg.mxu0
    %v1357 = vadd.f32 %v206, %v1354
    %v1358 = vmul.f32 %v1357, 0.5
    %v1359 = vtanh.pop %v1358
    %v1360 = vadd.f32 %v1359, 1.0
    %v1361 = vmul.f32 %v1360, 0.5
    %v1362 = vtanh.pop %v1357
    %v1363 = vmul.f32 %v1361, %v1107
    %1365 = vrot.lane.b32.xlu0 %v1362, 32
    %v1366 = vpop.permute.xlu0 %1365
    %v1368 = vmul.f32 %v1361, %v1366
    %1370 = vrot.lane.b32.xlu0 %v1368, 32
    %v1371 = vpop.permute.xlu0 %1370
    %v1373 = vadd.f32 %v1363, %v1371
    %v1374 = vtanh.pop %v1373
    %1376 = vrot.lane.b32.xlu0 %v1374, 32
    %v1377 = vpop.permute.xlu0 %1376
    %v1379 = vmul.f32 %v1361, %v1377
    %1381 = vrot.lane.b32.xlu0 %v1286, 64
    %v1382 = vpop.permute.xlu0 %1381
    %v1383 = vsel %vm224, %v1382, 0
    %1385 = vmatprep.subr.mxu0 0.0
    %1386 = vmatpush1.msra.mxu0 %v66
    %1387 = vmatprep.subr.mxu0 0.0
    %1388 = vmatpush1.msra.mxu0 %v67
    %1389 = vmatprep.subr.mxu0 0.0
    %1390 = vmatpush1.msra.mxu0 %v68
    %1391 = vmatprep.subr.mxu0 0.0
    %1392 = vmatpush1.msra.mxu0 %v69
    %1393 = vmatprep.subr.mxu0 0.0
    %1394 = vmatpush1.msra.mxu0 0.0
    %1395 = vmatprep.subr.mxu0 0.0
    %1396 = vmatpush1.msra.mxu0 0.0
    %1397 = vmatprep.subr.mxu0 0.0
    %1398 = vmatpush1.msra.mxu0 0.0
    %1399 = vmatprep.subr.mxu0 0.0
    %1400 = vmatpush1.msra.mxu0 0.0
    %1401 = vmatprep.subr.mxu0 0.0
    %1402 = vmatpush1.msra.mxu0 0.0
    %1403 = vmatprep.subr.mxu0 0.0
    %1404 = vmatpush1.msra.mxu0 0.0
    %1405 = vmatprep.subr.mxu0 0.0
    %1406 = vmatpush1.msra.mxu0 0.0
    %1407 = vmatprep.subr.mxu0 0.0
    %1408 = vmatpush1.msra.mxu0 0.0
    %1409 = vmatprep.subr.mxu0 0.0
    %1410 = vmatpush1.msra.mxu0 0.0
    %1411 = vmatprep.subr.mxu0 0.0
    %1412 = vmatpush1.msra.mxu0 0.0
    %1413 = vmatprep.subr.mxu0 0.0
    %1414 = vmatpush1.msra.mxu0 0.0
    %1415 = vmatprep.subr.mxu0 0.0
    %1416 = vmatpush1.msra.mxu0 0.0
    %1417 = vmatprep.subr.mxu0 0.0
    %1418 = vmatpush1.msra.mxu0 0.0
    %1419 = vmatprep.subr.mxu0 0.0
    %1420 = vmatpush1.msra.mxu0 0.0
    %1421 = vmatprep.subr.mxu0 0.0
    %1422 = vmatpush1.msra.mxu0 0.0
    %1423 = vmatprep.subr.mxu0 0.0
    %1424 = vmatpush1.msra.mxu0 0.0
    %1425 = vmatprep.subr.mxu0 0.0
    %1426 = vmatpush1.msra.mxu0 0.0
    %1427 = vmatprep.subr.mxu0 0.0
    %1428 = vmatpush1.msra.mxu0 0.0
    %1429 = vmatprep.subr.mxu0 0.0
    %1430 = vmatpush1.msra.mxu0 0.0
    %1431 = vmatprep.subr.mxu0 0.0
    %1432 = vmatpush1.msra.mxu0 0.0
    %1433 = vmatprep.subr.mxu0 0.0
    %1434 = vmatpush1.msra.mxu0 0.0
    %1435 = vmatprep.subr.mxu0 0.0
    %1436 = vmatpush1.msra.mxu0 0.0
    %1437 = vmatprep.subr.mxu0 0.0
    %1438 = vmatpush1.msra.mxu0 0.0
    %1439 = vmatprep.subr.mxu0 0.0
    %1440 = vmatpush1.msra.mxu0 0.0
    %1441 = vmatprep.subr.mxu0 0.0
    %1442 = vmatpush1.msra.mxu0 0.0
    %1443 = vmatprep.subr.mxu0 0.0
    %1444 = vmatpush1.msra.mxu0 0.0
    %1445 = vmatprep.subr.mxu0 0.0
    %1446 = vmatpush1.msra.mxu0 0.0
    %1447 = vmatprep.subr.mxu0 0.0
    %1448 = vmatpush1.msra.mxu0 0.0
    %1449 = vmatprep.mubr.f32.mxu0 0.0
    %1450 = vmatmul.mubr.f32.gmra.mrb[0].mxu0 %v1383
    %v1451 = vpop.f32.mrb[0].mxu0
    %v1452 = vadd.f32 0.0, %v1451
    %v1453 = vpop.f32.mrb[0].mxu0
    %1454 = vdwg.mxu0
    %1456 = vrot.lane.b32.xlu0 %v1379, 64
    %v1457 = vpop.permute.xlu0 %1456
    %v1458 = vsel %vm224, %v1457, 0
    %1460 = vmatprep.subr.mxu0 0.0
    %1461 = vmatpush1.msra.mxu0 %v62
    %1462 = vmatprep.subr.mxu0 0.0
    %1463 = vmatpush1.msra.mxu0 %v63
    %1464 = vmatprep.subr.mxu0 0.0
    %1465 = vmatpush1.msra.mxu0 %v64
    %1466 = vmatprep.subr.mxu0 0.0
    %1467 = vmatpush1.msra.mxu0 %v65
    %1468 = vmatprep.subr.mxu0 0.0
    %1469 = vmatpush1.msra.mxu0 0.0
    %1470 = vmatprep.subr.mxu0 0.0
    %1471 = vmatpush1.msra.mxu0 0.0
    %1472 = vmatprep.subr.mxu0 0.0
    %1473 = vmatpush1.msra.mxu0 0.0
    %1474 = vmatprep.subr.mxu0 0.0
    %1475 = vmatpush1.msra.mxu0 0.0
    %1476 = vmatprep.subr.mxu0 0.0
    %1477 = vmatpush1.msra.mxu0 0.0
    %1478 = vmatprep.subr.mxu0 0.0
    %1479 = vmatpush1.msra.mxu0 0.0
    %1480 = vmatprep.subr.mxu0 0.0
    %1481 = vmatpush1.msra.mxu0 0.0
    %1482 = vmatprep.subr.mxu0 0.0
    %1483 = vmatpush1.msra.mxu0 0.0
    %1484 = vmatprep.subr.mxu0 0.0
    %1485 = vmatpush1.msra.mxu0 0.0
    %1486 = vmatprep.subr.mxu0 0.0
    %1487 = vmatpush1.msra.mxu0 0.0
    %1488 = vmatprep.subr.mxu0 0.0
    %1489 = vmatpush1.msra.mxu0 0.0
    %1490 = vmatprep.subr.mxu0 0.0
    %1491 = vmatpush1.msra.mxu0 0.0
    %1492 = vmatprep.subr.mxu0 0.0
    %1493 = vmatpush1.msra.mxu0 0.0
    %1494 = vmatprep.subr.mxu0 0.0
    %1495 = vmatpush1.msra.mxu0 0.0
    %1496 = vmatprep.subr.mxu0 0.0
    %1497 = vmatpush1.msra.mxu0 0.0
    %1498 = vmatprep.subr.mxu0 0.0
    %1499 = vmatpush1.msra.mxu0 0.0
    %1500 = vmatprep.subr.mxu0 0.0
    %1501 = vmatpush1.msra.mxu0 0.0
    %1502 = vmatprep.subr.mxu0 0.0
    %1503 = vmatpush1.msra.mxu0 0.0
    %1504 = vmatprep.subr.mxu0 0.0
    %1505 = vmatpush1.msra.mxu0 0.0
    %1506 = vmatprep.subr.mxu0 0.0
    %1507 = vmatpush1.msra.mxu0 0.0
    %1508 = vmatprep.subr.mxu0 0.0
    %1509 = vmatpush1.msra.mxu0 0.0
    %1510 = vmatprep.subr.mxu0 0.0
    %1511 = vmatpush1.msra.mxu0 0.0
    %1512 = vmatprep.subr.mxu0 0.0
    %1513 = vmatpush1.msra.mxu0 0.0
    %1514 = vmatprep.subr.mxu0 0.0
    %1515 = vmatpush1.msra.mxu0 0.0
    %1516 = vmatprep.subr.mxu0 0.0
    %1517 = vmatpush1.msra.mxu0 0.0
    %1518 = vmatprep.subr.mxu0 0.0
    %1519 = vmatpush1.msra.mxu0 0.0
    %1520 = vmatprep.subr.mxu0 0.0
    %1521 = vmatpush1.msra.mxu0 0.0
    %1522 = vmatprep.subr.mxu0 0.0
    %1523 = vmatpush1.msra.mxu0 0.0
    %1524 = vmatprep.mubr.f32.mxu0 0.0
    %1525 = vmatmul.mubr.f32.gmra.mrb[0].mxu0 %v1458
    %v1526 = vpop.f32.mrb[0].mxu0
    %v1527 = vadd.f32 %v1452, %v1526
    %v1528 = vpop.f32.mrb[0].mxu0
    %1529 = vdwg.mxu0
    %v1530 = vadd.f32 %v1527, %v75
    %v1531 = vmul.f32 %v1530, 0.5
    %v1532 = vtanh.pop %v1531
    %v1533 = vadd.f32 %v1532, 1.0
    %v1534 = vmul.f32 %v1533, 0.5
    %v1535 = vtanh.pop %v1530
    %v1536 = vmul.f32 %v1534, %v1280
    %1538 = vrot.lane.b32.xlu0 %v1535, 32
    %v1539 = vpop.permute.xlu0 %1538
    %v1541 = vmul.f32 %v1534, %v1539
    %1543 = vrot.lane.b32.xlu0 %v1541, 32
    %v1544 = vpop.permute.xlu0 %1543
    %v1546 = vadd.f32 %v1536, %v1544
    %v1547 = vtanh.pop %v1546
    %1549 = vrot.lane.b32.xlu0 %v1547, 32
    %v1550 = vpop.permute.xlu0 %1549
    %v1552 = vmul.f32 %v1534, %v1550
    %1553 = vmatprep.subr.mxu0 0.0
    %1554 = vmatpush1.msra.mxu0 %v58
    %1555 = vmatprep.subr.mxu0 0.0
    %1556 = vmatpush1.msra.mxu0 %v59
    %1557 = vmatprep.subr.mxu0 0.0
    %1558 = vmatpush1.msra.mxu0 %v60
    %1559 = vmatprep.subr.mxu0 0.0
    %1560 = vmatpush1.msra.mxu0 %v61
    %1561 = vmatprep.subr.mxu0 0.0
    %1562 = vmatpush1.msra.mxu0 0.0
    %1563 = vmatprep.subr.mxu0 0.0
    %1564 = vmatpush1.msra.mxu0 0.0
    %1565 = vmatprep.subr.mxu0 0.0
    %1566 = vmatpush1.msra.mxu0 0.0
    %1567 = vmatprep.subr.mxu0 0.0
    %1568 = vmatpush1.msra.mxu0 0.0
    %1569 = vmatprep.subr.mxu0 0.0
    %1570 = vmatpush1.msra.mxu0 0.0
    %1571 = vmatprep.subr.mxu0 0.0
    %1572 = vmatpush1.msra.mxu0 0.0
    %1573 = vmatprep.subr.mxu0 0.0
    %1574 = vmatpush1.msra.mxu0 0.0
    %1575 = vmatprep.subr.mxu0 0.0
    %1576 = vmatpush1.msra.mxu0 0.0
    %1577 = vmatprep.subr.mxu0 0.0
    %1578 = vmatpush1.msra.mxu0 0.0
    %1579 = vmatprep.subr.mxu0 0.0
    %1580 = vmatpush1.msra.mxu0 0.0
    %1581 = vmatprep.subr.mxu0 0.0
    %1582 = vmatpush1.msra.mxu0 0.0
    %1583 = vmatprep.subr.mxu0 0.0
    %1584 = vmatpush1.msra.mxu0 0.0
    %1585 = vmatprep.subr.mxu0 0.0
    %1586 = vmatpush1.msra.mxu0 0.0
    %1587 = vmatprep.subr.mxu0 0.0
    %1588 = vmatpush1.msra.mxu0 0.0
    %1589 = vmatprep.subr.mxu0 0.0
    %1590 = vmatpush1.msra.mxu0 0.0
    %1591 = vmatprep.subr.mxu0 0.0
    %1592 = vmatpush1.msra.mxu0 0.0
    %1593 = vmatprep.subr.mxu0 0.0
    %1594 = vmatpush1.msra.mxu0 0.0
    %1595 = vmatprep.subr.mxu0 0.0
    %1596 = vmatpush1.msra.mxu0 0.0
    %1597 = vmatprep.subr.mxu0 0.0
    %1598 = vmatpush1.msra.mxu0 0.0
    %1599 = vmatprep.subr.mxu0 0.0
    %1600 = vmatpush1.msra.mxu0 0.0
    %1601 = vmatprep.subr.mxu0 0.0
    %1602 = vmatpush1.msra.mxu0 0.0
    %1603 = vmatprep.subr.mxu0 0.0
    %1604 = vmatpush1.msra.mxu0 0.0
    %1605 = vmatprep.subr.mxu0 0.0
    %1606 = vmatpush1.msra.mxu0 0.0
    %1607 = vmatprep.subr.mxu0 0.0
    %1608 = vmatpush1.msra.mxu0 0.0
    %1609 = vmatprep.subr.mxu0 0.0
    %1610 = vmatpush1.msra.mxu0 0.0
    %1611 = vmatprep.subr.mxu0 0.0
    %1612 = vmatpush1.msra.mxu0 0.0
    %1613 = vmatprep.subr.mxu0 0.0
    %1614 = vmatpush1.msra.mxu0 0.0
    %1615 = vmatprep.subr.mxu0 0.0
    %1616 = vmatpush1.msra.mxu0 0.0
    %1617 = vmatprep.mubr.f32.mxu0 0.0
    %1618 = vmatmul.mubr.f32.gmra.mrb[0].mxu0 %v1458
    %v1619 = vpop.f32.mrb[0].mxu0
    %v1620 = vadd.f32 0.0, %v1619
    %v1621 = vpop.f32.mrb[0].mxu0
    %1622 = vdwg.mxu0
    %v1623 = vadd.f32 %v211, %v1620
    %v1624 = vmul.f32 %v1623, 0.5
    %v1625 = vtanh.pop %v1624
    %v1626 = vadd.f32 %v1625, 1.0
    %v1627 = vmul.f32 %v1626, 0.5
    %v1628 = vtanh.pop %v1623
    %v1629 = vmul.f32 %v1627, %v1373
    %1631 = vrot.lane.b32.xlu0 %v1628, 32
    %v1632 = vpop.permute.xlu0 %1631
    %v1634 = vmul.f32 %v1627, %v1632
    %1636 = vrot.lane.b32.xlu0 %v1634, 32
    %v1637 = vpop.permute.xlu0 %1636
    %v1639 = vadd.f32 %v1629, %v1637
    %v1640 = vtanh.pop %v1639
    %1642 = vrot.lane.b32.xlu0 %v1640, 32
    %v1643 = vpop.permute.xlu0 %1642
    %v1645 = vmul.f32 %v1627, %v1643
    %1647 = vrot.lane.b32.xlu0 %v1552, 64
    %v1648 = vpop.permute.xlu0 %1647
    %v1649 = vsel %vm224, %v1648, 0
    %1651 = vmatprep.subr.mxu0 0.0
    %1652 = vmatpush1.msra.mxu0 %v66
    %1653 = vmatprep.subr.mxu0 0.0
    %1654 = vmatpush1.msra.mxu0 %v67
    %1655 = vmatprep.subr.mxu0 0.0
    %1656 = vmatpush1.msra.mxu0 %v68
    %1657 = vmatprep.subr.mxu0 0.0
    %1658 = vmatpush1.msra.mxu0 %v69
    %1659 = vmatprep.subr.mxu0 0.0
    %1660 = vmatpush1.msra.mxu0 0.0
    %1661 = vmatprep.subr.mxu0 0.0
    %1662 = vmatpush1.msra.mxu0 0.0
    %1663 = vmatprep.subr.mxu0 0.0
    %1664 = vmatpush1.msra.mxu0 0.0
    %1665 = vmatprep.subr.mxu0 0.0
    %1666 = vmatpush1.msra.mxu0 0.0
    %1667 = vmatprep.subr.mxu0 0.0
    %1668 = vmatpush1.msra.mxu0 0.0
    %1669 = vmatprep.subr.mxu0 0.0
    %1670 = vmatpush1.msra.mxu0 0.0
    %1671 = vmatprep.subr.mxu0 0.0
    %1672 = vmatpush1.msra.mxu0 0.0
    %1673 = vmatprep.subr.mxu0 0.0
    %1674 = vmatpush1.msra.mxu0 0.0
    %1675 = vmatprep.subr.mxu0 0.0
    %1676 = vmatpush1.msra.mxu0 0.0
    %1677 = vmatprep.subr.mxu0 0.0
    %1678 = vmatpush1.msra.mxu0 0.0
    %1679 = vmatprep.subr.mxu0 0.0
    %1680 = vmatpush1.msra.mxu0 0.0
    %1681 = vmatprep.subr.mxu0 0.0
    %1682 = vmatpush1.msra.mxu0 0.0
    %1683 = vmatprep.subr.mxu0 0.0
    %1684 = vmatpush1.msra.mxu0 0.0
    %1685 = vmatprep.subr.mxu0 0.0
    %1686 = vmatpush1.msra.mxu0 0.0
    %1687 = vmatprep.subr.mxu0 0.0
    %1688 = vmatpush1.msra.mxu0 0.0
    %1689 = vmatprep.subr.mxu0 0.0
    %1690 = vmatpush1.msra.mxu0 0.0
    %1691 = vmatprep.subr.mxu0 0.0
    %1692 = vmatpush1.msra.mxu0 0.0
    %1693 = vmatprep.subr.mxu0 0.0
    %1694 = vmatpush1.msra.mxu0 0.0
    %1695 = vmatprep.subr.mxu0 0.0
    %1696 = vmatpush1.msra.mxu0 0.0
    %1697 = vmatprep.subr.mxu0 0.0
    %1698 = vmatpush1.msra.mxu0 0.0
    %1699 = vmatprep.subr.mxu0 0.0
    %1700 = vmatpush1.msra.mxu0 0.0
    %1701 = vmatprep.subr.mxu0 0.0
    %1702 = vmatpush1.msra.mxu0 0.0
    %1703 = vmatprep.subr.mxu0 0.0
    %1704 = vmatpush1.msra.mxu0 0.0
    %1705 = vmatprep.subr.mxu0 0.0
    %1706 = vmatpush1.msra.mxu0 0.0
    %1707 = vmatprep.subr.mxu0 0.0
    %1708 = vmatpush1.msra.mxu0 0.0
    %1709 = vmatprep.subr.mxu0 0.0
    %1710 = vmatpush1.msra.mxu0 0.0
    %1711 = vmatprep.subr.mxu0 0.0
    %1712 = vmatpush1.msra.mxu0 0.0
    %1713 = vmatprep.subr.mxu0 0.0
    %1714 = vmatpush1.msra.mxu0 0.0
    %1715 = vmatprep.mubr.f32.mxu0 0.0
    %1716 = vmatmul.mubr.f32.gmra.mrb[0].mxu0 %v1649
    %v1717 = vpop.f32.mrb[0].mxu0
    %v1718 = vadd.f32 0.0, %v1717
    %v1719 = vpop.f32.mrb[0].mxu0
    %1720 = vdwg.mxu0
    %1722 = vrot.lane.b32.xlu0 %v1645, 64
    %v1723 = vpop.permute.xlu0 %1722
    %v1724 = vsel %vm224, %v1723, 0
    %1726 = vmatprep.subr.mxu0 0.0
    %1727 = vmatpush1.msra.mxu0 %v62
    %1728 = vmatprep.subr.mxu0 0.0
    %1729 = vmatpush1.msra.mxu0 %v63
    %1730 = vmatprep.subr.mxu0 0.0
    %1731 = vmatpush1.msra.mxu0 %v64
    %1732 = vmatprep.subr.mxu0 0.0
    %1733 = vmatpush1.msra.mxu0 %v65
    %1734 = vmatprep.subr.mxu0 0.0
    %1735 = vmatpush1.msra.mxu0 0.0
    %1736 = vmatprep.subr.mxu0 0.0
    %1737 = vmatpush1.msra.mxu0 0.0
    %1738 = vmatprep.subr.mxu0 0.0
    %1739 = vmatpush1.msra.mxu0 0.0
    %1740 = vmatprep.subr.mxu0 0.0
    %1741 = vmatpush1.msra.mxu0 0.0
    %1742 = vmatprep.subr.mxu0 0.0
    %1743 = vmatpush1.msra.mxu0 0.0
    %1744 = vmatprep.subr.mxu0 0.0
    %1745 = vmatpush1.msra.mxu0 0.0
    %1746 = vmatprep.subr.mxu0 0.0
    %1747 = vmatpush1.msra.mxu0 0.0
    %1748 = vmatprep.subr.mxu0 0.0
    %1749 = vmatpush1.msra.mxu0 0.0
    %1750 = vmatprep.subr.mxu0 0.0
    %1751 = vmatpush1.msra.mxu0 0.0
    %1752 = vmatprep.subr.mxu0 0.0
    %1753 = vmatpush1.msra.mxu0 0.0
    %1754 = vmatprep.subr.mxu0 0.0
    %1755 = vmatpush1.msra.mxu0 0.0
    %1756 = vmatprep.subr.mxu0 0.0
    %1757 = vmatpush1.msra.mxu0 0.0
    %1758 = vmatprep.subr.mxu0 0.0
    %1759 = vmatpush1.msra.mxu0 0.0
    %1760 = vmatprep.subr.mxu0 0.0
    %1761 = vmatpush1.msra.mxu0 0.0
    %1762 = vmatprep.subr.mxu0 0.0
    %1763 = vmatpush1.msra.mxu0 0.0
    %1764 = vmatprep.subr.mxu0 0.0
    %1765 = vmatpush1.msra.mxu0 0.0
    %1766 = vmatprep.subr.mxu0 0.0
    %1767 = vmatpush1.msra.mxu0 0.0
    %1768 = vmatprep.subr.mxu0 0.0
    %1769 = vmatpush1.msra.mxu0 0.0
    %1770 = vmatprep.subr.mxu0 0.0
    %1771 = vmatpush1.msra.mxu0 0.0
    %1772 = vmatprep.subr.mxu0 0.0
    %1773 = vmatpush1.msra.mxu0 0.0
    %1774 = vmatprep.subr.mxu0 0.0
    %1775 = vmatpush1.msra.mxu0 0.0
    %1776 = vmatprep.subr.mxu0 0.0
    %1777 = vmatpush1.msra.mxu0 0.0
    %1778 = vmatprep.subr.mxu0 0.0
    %1779 = vmatpush1.msra.mxu0 0.0
    %1780 = vmatprep.subr.mxu0 0.0
    %1781 = vmatpush1.msra.mxu0 0.0
    %1782 = vmatprep.subr.mxu0 0.0
    %1783 = vmatpush1.msra.mxu0 0.0
    %1784 = vmatprep.subr.mxu0 0.0
    %1785 = vmatpush1.msra.mxu0 0.0
    %1786 = vmatprep.subr.mxu0 0.0
    %1787 = vmatpush1.msra.mxu0 0.0
    %1788 = vmatprep.subr.mxu0 0.0
    %1789 = vmatpush1.msra.mxu0 0.0
    %1790 = vmatprep.mubr.f32.mxu0 0.0
    %1791 = vmatmul.mubr.f32.gmra.mrb[0].mxu0 %v1724
    %v1792 = vpop.f32.mrb[0].mxu0
    %v1793 = vadd.f32 %v1718, %v1792
    %v1794 = vpop.f32.mrb[0].mxu0
    %1795 = vdwg.mxu0
    %v1796 = vadd.f32 %v1793, %v75
    %v1797 = vmul.f32 %v1796, 0.5
    %v1798 = vtanh.pop %v1797
    %v1799 = vadd.f32 %v1798, 1.0
    %v1800 = vmul.f32 %v1799, 0.5
    %v1801 = vtanh.pop %v1796
    %v1802 = vmul.f32 %v1800, %v1546
    %1804 = vrot.lane.b32.xlu0 %v1801, 32
    %v1805 = vpop.permute.xlu0 %1804
    %v1807 = vmul.f32 %v1800, %v1805
    %1809 = vrot.lane.b32.xlu0 %v1807, 32
    %v1810 = vpop.permute.xlu0 %1809
    %v1812 = vadd.f32 %v1802, %v1810
    %v1813 = vtanh.pop %v1812
    %1815 = vrot.lane.b32.xlu0 %v1813, 32
    %v1816 = vpop.permute.xlu0 %1815
    %v1818 = vmul.f32 %v1800, %v1816
    %1819 = vmatprep.subr.mxu0 0.0
    %1820 = vmatpush1.msra.mxu0 %v58
    %1821 = vmatprep.subr.mxu0 0.0
    %1822 = vmatpush1.msra.mxu0 %v59
    %1823 = vmatprep.subr.mxu0 0.0
    %1824 = vmatpush1.msra.mxu0 %v60
    %1825 = vmatprep.subr.mxu0 0.0
    %1826 = vmatpush1.msra.mxu0 %v61
    %1827 = vmatprep.subr.mxu0 0.0
    %1828 = vmatpush1.msra.mxu0 0.0
    %1829 = vmatprep.subr.mxu0 0.0
    %1830 = vmatpush1.msra.mxu0 0.0
    %1831 = vmatprep.subr.mxu0 0.0
    %1832 = vmatpush1.msra.mxu0 0.0
    %1833 = vmatprep.subr.mxu0 0.0
    %1834 = vmatpush1.msra.mxu0 0.0
    %1835 = vmatprep.subr.mxu0 0.0
    %1836 = vmatpush1.msra.mxu0 0.0
    %1837 = vmatprep.subr.mxu0 0.0
    %1838 = vmatpush1.msra.mxu0 0.0
    %1839 = vmatprep.subr.mxu0 0.0
    %1840 = vmatpush1.msra.mxu0 0.0
    %1841 = vmatprep.subr.mxu0 0.0
    %1842 = vmatpush1.msra.mxu0 0.0
    %1843 = vmatprep.subr.mxu0 0.0
    %1844 = vmatpush1.msra.mxu0 0.0
    %1845 = vmatprep.subr.mxu0 0.0
    %1846 = vmatpush1.msra.mxu0 0.0
    %1847 = vmatprep.subr.mxu0 0.0
    %1848 = vmatpush1.msra.mxu0 0.0
    %1849 = vmatprep.subr.mxu0 0.0
    %1850 = vmatpush1.msra.mxu0 0.0
    %1851 = vmatprep.subr.mxu0 0.0
    %1852 = vmatpush1.msra.mxu0 0.0
    %1853 = vmatprep.subr.mxu0 0.0
    %1854 = vmatpush1.msra.mxu0 0.0
    %1855 = vmatprep.subr.mxu0 0.0
    %1856 = vmatpush1.msra.mxu0 0.0
    %1857 = vmatprep.subr.mxu0 0.0
    %1858 = vmatpush1.msra.mxu0 0.0
    %1859 = vmatprep.subr.mxu0 0.0
    %1860 = vmatpush1.msra.mxu0 0.0
    %1861 = vmatprep.subr.mxu0 0.0
    %1862 = vmatpush1.msra.mxu0 0.0
    %1863 = vmatprep.subr.mxu0 0.0
    %1864 = vmatpush1.msra.mxu0 0.0
    %1865 = vmatprep.subr.mxu0 0.0
    %1866 = vmatpush1.msra.mxu0 0.0
    %1867 = vmatprep.subr.mxu0 0.0
    %1868 = vmatpush1.msra.mxu0 0.0
    %1869 = vmatprep.subr.mxu0 0.0
    %1870 = vmatpush1.msra.mxu0 0.0
    %1871 = vmatprep.subr.mxu0 0.0
    %1872 = vmatpush1.msra.mxu0 0.0
    %1873 = vmatprep.subr.mxu0 0.0
    %1874 = vmatpush1.msra.mxu0 0.0
    %1875 = vmatprep.subr.mxu0 0.0
    %1876 = vmatpush1.msra.mxu0 0.0
    %1877 = vmatprep.subr.mxu0 0.0
    %1878 = vmatpush1.msra.mxu0 0.0
    %1879 = vmatprep.subr.mxu0 0.0
    %1880 = vmatpush1.msra.mxu0 0.0
    %1881 = vmatprep.subr.mxu0 0.0
    %1882 = vmatpush1.msra.mxu0 0.0
    %1883 = vmatprep.mubr.f32.mxu0 0.0
    %1884 = vmatmul.mubr.f32.gmra.mrb[0].mxu0 %v1724
    %v1885 = vpop.f32.mrb[0].mxu0
    %v1886 = vadd.f32 0.0, %v1885
    %v1887 = vpop.f32.mrb[0].mxu0
    %1888 = vdwg.mxu0
    %v1889 = vadd.f32 %v216, %v1886
    %v1890 = vmul.f32 %v1889, 0.5
    %v1891 = vtanh.pop %v1890
    %v1892 = vadd.f32 %v1891, 1.0
    %v1893 = vmul.f32 %v1892, 0.5
    %v1894 = vtanh.pop %v1889
    %v1895 = vmul.f32 %v1893, %v1639
    %1897 = vrot.lane.b32.xlu0 %v1894, 32
    %v1898 = vpop.permute.xlu0 %1897
    %v1900 = vmul.f32 %v1893, %v1898
    %1902 = vrot.lane.b32.xlu0 %v1900, 32
    %v1903 = vpop.permute.xlu0 %1902
    %v1905 = vadd.f32 %v1895, %v1903
    %v1906 = vtanh.pop %v1905
    %1908 = vrot.lane.b32.xlu0 %v1906, 32
    %v1909 = vpop.permute.xlu0 %1908
    %v1911 = vmul.f32 %v1893, %v1909
    %1913 = vrot.lane.b32.xlu0 %v1818, 64
    %v1914 = vpop.permute.xlu0 %1913
    %v1915 = vsel %vm224, %v1914, 0
    %1917 = vmatprep.subr.mxu0 0.0
    %1918 = vmatpush1.msra.mxu0 %v66
    %1919 = vmatprep.subr.mxu0 0.0
    %1920 = vmatpush1.msra.mxu0 %v67
    %1921 = vmatprep.subr.mxu0 0.0
    %1922 = vmatpush1.msra.mxu0 %v68
    %1923 = vmatprep.subr.mxu0 0.0
    %1924 = vmatpush1.msra.mxu0 %v69
    %1925 = vmatprep.subr.mxu0 0.0
    %1926 = vmatpush1.msra.mxu0 0.0
    %1927 = vmatprep.subr.mxu0 0.0
    %1928 = vmatpush1.msra.mxu0 0.0
    %1929 = vmatprep.subr.mxu0 0.0
    %1930 = vmatpush1.msra.mxu0 0.0
    %1931 = vmatprep.subr.mxu0 0.0
    %1932 = vmatpush1.msra.mxu0 0.0
    %1933 = vmatprep.subr.mxu0 0.0
    %1934 = vmatpush1.msra.mxu0 0.0
    %1935 = vmatprep.subr.mxu0 0.0
    %1936 = vmatpush1.msra.mxu0 0.0
    %1937 = vmatprep.subr.mxu0 0.0
    %1938 = vmatpush1.msra.mxu0 0.0
    %1939 = vmatprep.subr.mxu0 0.0
    %1940 = vmatpush1.msra.mxu0 0.0
    %1941 = vmatprep.subr.mxu0 0.0
    %1942 = vmatpush1.msra.mxu0 0.0
    %1943 = vmatprep.subr.mxu0 0.0
    %1944 = vmatpush1.msra.mxu0 0.0
    %1945 = vmatprep.subr.mxu0 0.0
    %1946 = vmatpush1.msra.mxu0 0.0
    %1947 = vmatprep.subr.mxu0 0.0
    %1948 = vmatpush1.msra.mxu0 0.0
    %1949 = vmatprep.subr.mxu0 0.0
    %1950 = vmatpush1.msra.mxu0 0.0
    %1951 = vmatprep.subr.mxu0 0.0
    %1952 = vmatpush1.msra.mxu0 0.0
    %1953 = vmatprep.subr.mxu0 0.0
    %1954 = vmatpush1.msra.mxu0 0.0
    %1955 = vmatprep.subr.mxu0 0.0
    %1956 = vmatpush1.msra.mxu0 0.0
    %1957 = vmatprep.subr.mxu0 0.0
    %1958 = vmatpush1.msra.mxu0 0.0
    %1959 = vmatprep.subr.mxu0 0.0
    %1960 = vmatpush1.msra.mxu0 0.0
    %1961 = vmatprep.subr.mxu0 0.0
    %1962 = vmatpush1.msra.mxu0 0.0
    %1963 = vmatprep.subr.mxu0 0.0
    %1964 = vmatpush1.msra.mxu0 0.0
    %1965 = vmatprep.subr.mxu0 0.0
    %1966 = vmatpush1.msra.mxu0 0.0
    %1967 = vmatprep.subr.mxu0 0.0
    %1968 = vmatpush1.msra.mxu0 0.0
    %1969 = vmatprep.subr.mxu0 0.0
    %1970 = vmatpush1.msra.mxu0 0.0
    %1971 = vmatprep.subr.mxu0 0.0
    %1972 = vmatpush1.msra.mxu0 0.0
    %1973 = vmatprep.subr.mxu0 0.0
    %1974 = vmatpush1.msra.mxu0 0.0
    %1975 = vmatprep.subr.mxu0 0.0
    %1976 = vmatpush1.msra.mxu0 0.0
    %1977 = vmatprep.subr.mxu0 0.0
    %1978 = vmatpush1.msra.mxu0 0.0
    %1979 = vmatprep.subr.mxu0 0.0
    %1980 = vmatpush1.msra.mxu0 0.0
    %1981 = vmatprep.mubr.f32.mxu0 0.0
    %1982 = vmatmul.mubr.f32.gmra.mrb[0].mxu0 %v1915
    %v1983 = vpop.f32.mrb[0].mxu0
    %v1984 = vadd.f32 0.0, %v1983
    %v1985 = vpop.f32.mrb[0].mxu0
    %1986 = vdwg.mxu0
    %1988 = vrot.lane.b32.xlu0 %v1911, 64
    %v1989 = vpop.permute.xlu0 %1988
    %v1990 = vsel %vm224, %v1989, 0
    %1992 = vmatprep.subr.mxu0 0.0
    %1993 = vmatpush1.msra.mxu0 %v62
    %1994 = vmatprep.subr.mxu0 0.0
    %1995 = vmatpush1.msra.mxu0 %v63
    %1996 = vmatprep.subr.mxu0 0.0
    %1997 = vmatpush1.msra.mxu0 %v64
    %1998 = vmatprep.subr.mxu0 0.0
    %1999 = vmatpush1.msra.mxu0 %v65
    %2000 = vmatprep.subr.mxu0 0.0
    %2001 = vmatpush1.msra.mxu0 0.0
    %2002 = vmatprep.subr.mxu0 0.0
    %2003 = vmatpush1.msra.mxu0 0.0
    %2004 = vmatprep.subr.mxu0 0.0
    %2005 = vmatpush1.msra.mxu0 0.0
    %2006 = vmatprep.subr.mxu0 0.0
    %2007 = vmatpush1.msra.mxu0 0.0
    %2008 = vmatprep.subr.mxu0 0.0
    %2009 = vmatpush1.msra.mxu0 0.0
    %2010 = vmatprep.subr.mxu0 0.0
    %2011 = vmatpush1.msra.mxu0 0.0
    %2012 = vmatprep.subr.mxu0 0.0
    %2013 = vmatpush1.msra.mxu0 0.0
    %2014 = vmatprep.subr.mxu0 0.0
    %2015 = vmatpush1.msra.mxu0 0.0
    %2016 = vmatprep.subr.mxu0 0.0
    %2017 = vmatpush1.msra.mxu0 0.0
    %2018 = vmatprep.subr.mxu0 0.0
    %2019 = vmatpush1.msra.mxu0 0.0
    %2020 = vmatprep.subr.mxu0 0.0
    %2021 = vmatpush1.msra.mxu0 0.0
    %2022 = vmatprep.subr.mxu0 0.0
    %2023 = vmatpush1.msra.mxu0 0.0
    %2024 = vmatprep.subr.mxu0 0.0
    %2025 = vmatpush1.msra.mxu0 0.0
    %2026 = vmatprep.subr.mxu0 0.0
    %2027 = vmatpush1.msra.mxu0 0.0
    %2028 = vmatprep.subr.mxu0 0.0
    %2029 = vmatpush1.msra.mxu0 0.0
    %2030 = vmatprep.subr.mxu0 0.0
    %2031 = vmatpush1.msra.mxu0 0.0
    %2032 = vmatprep.subr.mxu0 0.0
    %2033 = vmatpush1.msra.mxu0 0.0
    %2034 = vmatprep.subr.mxu0 0.0
    %2035 = vmatpush1.msra.mxu0 0.0
    %2036 = vmatprep.subr.mxu0 0.0
    %2037 = vmatpush1.msra.mxu0 0.0
    %2038 = vmatprep.subr.mxu0 0.0
    %2039 = vmatpush1.msra.mxu0 0.0
    %2040 = vmatprep.subr.mxu0 0.0
    %2041 = vmatpush1.msra.mxu0 0.0
    %2042 = vmatprep.subr.mxu0 0.0
    %2043 = vmatpush1.msra.mxu0 0.0
    %2044 = vmatprep.subr.mxu0 0.0
    %2045 = vmatpush1.msra.mxu0 0.0
    %2046 = vmatprep.subr.mxu0 0.0
    %2047 = vmatpush1.msra.mxu0 0.0
    %2048 = vmatprep.subr.mxu0 0.0
    %2049 = vmatpush1.msra.mxu0 0.0
    %2050 = vmatprep.subr.mxu0 0.0
    %2051 = vmatpush1.msra.mxu0 0.0
    %2052 = vmatprep.subr.mxu0 0.0
    %2053 = vmatpush1.msra.mxu0 0.0
    %2054 = vmatprep.subr.mxu0 0.0
    %2055 = vmatpush1.msra.mxu0 0.0
    %2056 = vmatprep.mubr.f32.mxu0 0.0
    %2057 = vmatmul.mubr.f32.gmra.mrb[0].mxu0 %v1990
    %v2058 = vpop.f32.mrb[0].mxu0
    %v2059 = vadd.f32 %v1984, %v2058
    %v2060 = vpop.f32.mrb[0].mxu0
    %2061 = vdwg.mxu0
    %v2062 = vadd.f32 %v2059, %v75
    %v2063 = vmul.f32 %v2062, 0.5
    %v2064 = vtanh.pop %v2063
    %v2065 = vadd.f32 %v2064, 1.0
    %v2066 = vmul.f32 %v2065, 0.5
    %v2067 = vtanh.pop %v2062
    %v2068 = vmul.f32 %v2066, %v1812
    %2070 = vrot.lane.b32.xlu0 %v2067, 32
    %v2071 = vpop.permute.xlu0 %2070
    %v2073 = vmul.f32 %v2066, %v2071
    %2075 = vrot.lane.b32.xlu0 %v2073, 32
    %v2076 = vpop.permute.xlu0 %2075
    %v2078 = vadd.f32 %v2068, %v2076
    %v2079 = vtanh.pop %v2078
    %2081 = vrot.lane.b32.xlu0 %v2079, 32
    %v2082 = vpop.permute.xlu0 %2081
    %v2084 = vmul.f32 %v2066, %v2082
    %2085 = vmatprep.subr.mxu0 0.0
    %2086 = vmatpush1.msra.mxu0 %v58
    %2087 = vmatprep.subr.mxu0 0.0
    %2088 = vmatpush1.msra.mxu0 %v59
    %2089 = vmatprep.subr.mxu0 0.0
    %2090 = vmatpush1.msra.mxu0 %v60
    %2091 = vmatprep.subr.mxu0 0.0
    %2092 = vmatpush1.msra.mxu0 %v61
    %2093 = vmatprep.subr.mxu0 0.0
    %2094 = vmatpush1.msra.mxu0 0.0
    %2095 = vmatprep.subr.mxu0 0.0
    %2096 = vmatpush1.msra.mxu0 0.0
    %2097 = vmatprep.subr.mxu0 0.0
    %2098 = vmatpush1.msra.mxu0 0.0
    %2099 = vmatprep.subr.mxu0 0.0
    %2100 = vmatpush1.msra.mxu0 0.0
    %2101 = vmatprep.subr.mxu0 0.0
    %2102 = vmatpush1.msra.mxu0 0.0
    %2103 = vmatprep.subr.mxu0 0.0
    %2104 = vmatpush1.msra.mxu0 0.0
    %2105 = vmatprep.subr.mxu0 0.0
    %2106 = vmatpush1.msra.mxu0 0.0
    %2107 = vmatprep.subr.mxu0 0.0
    %2108 = vmatpush1.msra.mxu0 0.0
    %2109 = vmatprep.subr.mxu0 0.0
    %2110 = vmatpush1.msra.mxu0 0.0
    %2111 = vmatprep.subr.mxu0 0.0
    %2112 = vmatpush1.msra.mxu0 0.0
    %2113 = vmatprep.subr.mxu0 0.0
    %2114 = vmatpush1.msra.mxu0 0.0
    %2115 = vmatprep.subr.mxu0 0.0
    %2116 = vmatpush1.msra.mxu0 0.0
    %2117 = vmatprep.subr.mxu0 0.0
    %2118 = vmatpush1.msra.mxu0 0.0
    %2119 = vmatprep.subr.mxu0 0.0
    %2120 = vmatpush1.msra.mxu0 0.0
    %2121 = vmatprep.subr.mxu0 0.0
    %2122 = vmatpush1.msra.mxu0 0.0
    %2123 = vmatprep.subr.mxu0 0.0
    %2124 = vmatpush1.msra.mxu0 0.0
    %2125 = vmatprep.subr.mxu0 0.0
    %2126 = vmatpush1.msra.mxu0 0.0
    %2127 = vmatprep.subr.mxu0 0.0
    %2128 = vmatpush1.msra.mxu0 0.0
    %2129 = vmatprep.subr.mxu0 0.0
    %2130 = vmatpush1.msra.mxu0 0.0
    %2131 = vmatprep.subr.mxu0 0.0
    %2132 = vmatpush1.msra.mxu0 0.0
    %2133 = vmatprep.subr.mxu0 0.0
    %2134 = vmatpush1.msra.mxu0 0.0
    %2135 = vmatprep.subr.mxu0 0.0
    %2136 = vmatpush1.msra.mxu0 0.0
    %2137 = vmatprep.subr.mxu0 0.0
    %2138 = vmatpush1.msra.mxu0 0.0
    %2139 = vmatprep.subr.mxu0 0.0
    %2140 = vmatpush1.msra.mxu0 0.0
    %2141 = vmatprep.subr.mxu0 0.0
    %2142 = vmatpush1.msra.mxu0 0.0
    %2143 = vmatprep.subr.mxu0 0.0
    %2144 = vmatpush1.msra.mxu0 0.0
    %2145 = vmatprep.subr.mxu0 0.0
    %2146 = vmatpush1.msra.mxu0 0.0
    %2147 = vmatprep.subr.mxu0 0.0
    %2148 = vmatpush1.msra.mxu0 0.0
    %2149 = vmatprep.mubr.f32.mxu0 0.0
    %2150 = vmatmul.mubr.f32.gmra.mrb[0].mxu0 %v1990
    %v2151 = vpop.f32.mrb[0].mxu0
    %v2152 = vadd.f32 0.0, %v2151
    %v2153 = vpop.f32.mrb[0].mxu0
    %2154 = vdwg.mxu0
    %v2155 = vadd.f32 %v221, %v2152
    %v2156 = vmul.f32 %v2155, 0.5
    %v2157 = vtanh.pop %v2156
    %v2158 = vadd.f32 %v2157, 1.0
    %v2159 = vmul.f32 %v2158, 0.5
    %v2160 = vtanh.pop %v2155
    %v2161 = vmul.f32 %v2159, %v1905
    %2163 = vrot.lane.b32.xlu0 %v2160, 32
    %v2164 = vpop.permute.xlu0 %2163
    %v2166 = vmul.f32 %v2159, %v2164
    %2168 = vrot.lane.b32.xlu0 %v2166, 32
    %v2169 = vpop.permute.xlu0 %2168
    %v2171 = vadd.f32 %v2161, %v2169
    %v2172 = vtanh.pop %v2171
    %2174 = vrot.lane.b32.xlu0 %v2172, 32
    %v2175 = vpop.permute.xlu0 %2174
    %v2177 = vmul.f32 %v2159, %v2175
    %2179 = vrot.lane.b32.xlu0 %v2084, 64
    %v2180 = vpop.permute.xlu0 %2179
    %v2181 = vsel %vm224, %v2180, 0
    %2183 = vmatprep.subr.mxu0 0.0
    %2184 = vmatpush1.msra.mxu0 %v66
    %2185 = vmatprep.subr.mxu0 0.0
    %2186 = vmatpush1.msra.mxu0 %v67
    %2187 = vmatprep.subr.mxu0 0.0
    %2188 = vmatpush1.msra.mxu0 %v68
    %2189 = vmatprep.subr.mxu0 0.0
    %2190 = vmatpush1.msra.mxu0 %v69
    %2191 = vmatprep.subr.mxu0 0.0
    %2192 = vmatpush1.msra.mxu0 0.0
    %2193 = vmatprep.subr.mxu0 0.0
    %2194 = vmatpush1.msra.mxu0 0.0
    %2195 = vmatprep.subr.mxu0 0.0
    %2196 = vmatpush1.msra.mxu0 0.0
    %2197 = vmatprep.subr.mxu0 0.0
    %2198 = vmatpush1.msra.mxu0 0.0
    %2199 = vmatprep.subr.mxu0 0.0
    %2200 = vmatpush1.msra.mxu0 0.0
    %2201 = vmatprep.subr.mxu0 0.0
    %2202 = vmatpush1.msra.mxu0 0.0
    %2203 = vmatprep.subr.mxu0 0.0
    %2204 = vmatpush1.msra.mxu0 0.0
    %2205 = vmatprep.subr.mxu0 0.0
    %2206 = vmatpush1.msra.mxu0 0.0
    %2207 = vmatprep.subr.mxu0 0.0
    %2208 = vmatpush1.msra.mxu0 0.0
    %2209 = vmatprep.subr.mxu0 0.0
    %2210 = vmatpush1.msra.mxu0 0.0
    %2211 = vmatprep.subr.mxu0 0.0
    %2212 = vmatpush1.msra.mxu0 0.0
    %2213 = vmatprep.subr.mxu0 0.0
    %2214 = vmatpush1.msra.mxu0 0.0
    %2215 = vmatprep.subr.mxu0 0.0
    %2216 = vmatpush1.msra.mxu0 0.0
    %2217 = vmatprep.subr.mxu0 0.0
    %2218 = vmatpush1.msra.mxu0 0.0
    %2219 = vmatprep.subr.mxu0 0.0
    %2220 = vmatpush1.msra.mxu0 0.0
    %2221 = vmatprep.subr.mxu0 0.0
    %2222 = vmatpush1.msra.mxu0 0.0
    %2223 = vmatprep.subr.mxu0 0.0
    %2224 = vmatpush1.msra.mxu0 0.0
    %2225 = vmatprep.subr.mxu0 0.0
    %2226 = vmatpush1.msra.mxu0 0.0
    %2227 = vmatprep.subr.mxu0 0.0
    %2228 = vmatpush1.msra.mxu0 0.0
    %2229 = vmatprep.subr.mxu0 0.0
    %2230 = vmatpush1.msra.mxu0 0.0
    %2231 = vmatprep.subr.mxu0 0.0
    %2232 = vmatpush1.msra.mxu0 0.0
    %2233 = vmatprep.subr.mxu0 0.0
    %2234 = vmatpush1.msra.mxu0 0.0
    %2235 = vmatprep.subr.mxu0 0.0
    %2236 = vmatpush1.msra.mxu0 0.0
    %2237 = vmatprep.subr.mxu0 0.0
    %2238 = vmatpush1.msra.mxu0 0.0
    %2239 = vmatprep.subr.mxu0 0.0
    %2240 = vmatpush1.msra.mxu0 0.0
    %2241 = vmatprep.subr.mxu0 0.0
    %2242 = vmatpush1.msra.mxu0 0.0
    %2243 = vmatprep.subr.mxu0 0.0
    %2244 = vmatpush1.msra.mxu0 0.0
    %2245 = vmatprep.subr.mxu0 0.0
    %2246 = vmatpush1.msra.mxu0 0.0
    %2247 = vmatprep.mubr.f32.mxu0 0.0
    %2248 = vmatmul.mubr.f32.gmra.mrb[0].mxu0 %v2181
    %v2249 = vpop.f32.mrb[0].mxu0
    %v2250 = vadd.f32 0.0, %v2249
    %v2251 = vpop.f32.mrb[0].mxu0
    %2252 = vdwg.mxu0
    %2254 = vrot.lane.b32.xlu0 %v2177, 64
    %v2255 = vpop.permute.xlu0 %2254
    %v2256 = vsel %vm224, %v2255, 0
    %2258 = vmatprep.subr.mxu0 0.0
    %2259 = vmatpush1.msra.mxu0 %v62
    %2260 = vmatprep.subr.mxu0 0.0
    %2261 = vmatpush1.msra.mxu0 %v63
    %2262 = vmatprep.subr.mxu0 0.0
    %2263 = vmatpush1.msra.mxu0 %v64
    %2264 = vmatprep.subr.mxu0 0.0
    %2265 = vmatpush1.msra.mxu0 %v65
    %2266 = vmatprep.subr.mxu0 0.0
    %2267 = vmatpush1.msra.mxu0 0.0
    %2268 = vmatprep.subr.mxu0 0.0
    %2269 = vmatpush1.msra.mxu0 0.0
    %2270 = vmatprep.subr.mxu0 0.0
    %2271 = vmatpush1.msra.mxu0 0.0
    %2272 = vmatprep.subr.mxu0 0.0
    %2273 = vmatpush1.msra.mxu0 0.0
    %2274 = vmatprep.subr.mxu0 0.0
    %2275 = vmatpush1.msra.mxu0 0.0
    %2276 = vmatprep.subr.mxu0 0.0
    %2277 = vmatpush1.msra.mxu0 0.0
    %2278 = vmatprep.subr.mxu0 0.0
    %2279 = vmatpush1.msra.mxu0 0.0
    %2280 = vmatprep.subr.mxu0 0.0
    %2281 = vmatpush1.msra.mxu0 0.0
    %2282 = vmatprep.subr.mxu0 0.0
    %2283 = vmatpush1.msra.mxu0 0.0
    %2284 = vmatprep.subr.mxu0 0.0
    %2285 = vmatpush1.msra.mxu0 0.0
    %2286 = vmatprep.subr.mxu0 0.0
    %2287 = vmatpush1.msra.mxu0 0.0
    %2288 = vmatprep.subr.mxu0 0.0
    %2289 = vmatpush1.msra.mxu0 0.0
    %2290 = vmatprep.subr.mxu0 0.0
    %2291 = vmatpush1.msra.mxu0 0.0
    %2292 = vmatprep.subr.mxu0 0.0
    %2293 = vmatpush1.msra.mxu0 0.0
    %2294 = vmatprep.subr.mxu0 0.0
    %2295 = vmatpush1.msra.mxu0 0.0
    %2296 = vmatprep.subr.mxu0 0.0
    %2297 = vmatpush1.msra.mxu0 0.0
    %2298 = vmatprep.subr.mxu0 0.0
    %2299 = vmatpush1.msra.mxu0 0.0
    %2300 = vmatprep.subr.mxu0 0.0
    %2301 = vmatpush1.msra.mxu0 0.0
    %2302 = vmatprep.subr.mxu0 0.0
    %2303 = vmatpush1.msra.mxu0 0.0
    %2304 = vmatprep.subr.mxu0 0.0
    %2305 = vmatpush1.msra.mxu0 0.0
    %2306 = vmatprep.subr.mxu0 0.0
    %2307 = vmatpush1.msra.mxu0 0.0
    %2308 = vmatprep.subr.mxu0 0.0
    %2309 = vmatpush1.msra.mxu0 0.0
    %2310 = vmatprep.subr.mxu0 0.0
    %2311 = vmatpush1.msra.mxu0 0.0
    %2312 = vmatprep.subr.mxu0 0.0
    %2313 = vmatpush1.msra.mxu0 0.0
    %2314 = vmatprep.subr.mxu0 0.0
    %2315 = vmatpush1.msra.mxu0 0.0
    %2316 = vmatprep.subr.mxu0 0.0
    %2317 = vmatpush1.msra.mxu0 0.0
    %2318 = vmatprep.subr.mxu0 0.0
    %2319 = vmatpush1.msra.mxu0 0.0
    %2320 = vmatprep.subr.mxu0 0.0
    %2321 = vmatpush1.msra.mxu0 0.0
    %2322 = vmatprep.mubr.f32.mxu0 0.0
    %2323 = vmatmul.mubr.f32.gmra.mrb[0].mxu0 %v2256
    %v2324 = vpop.f32.mrb[0].mxu0
    %v2325 = vadd.f32 %v2250, %v2324
    %v2326 = vpop.f32.mrb[0].mxu0
    %2327 = vdwg.mxu0
    %v2328 = vadd.f32 %v2325, %v75
    %v2329 = vmul.f32 %v2328, 0.5
    %v2330 = vtanh.pop %v2329
    %v2331 = vadd.f32 %v2330, 1.0
    %v2332 = vmul.f32 %v2331, 0.5
    %v2333 = vtanh.pop %v2328
    %v2334 = vmul.f32 %v2332, %v2078
    %2336 = vrot.lane.b32.xlu0 %v2333, 32
    %v2337 = vpop.permute.xlu0 %2336
    %v2339 = vmul.f32 %v2332, %v2337
    %2341 = vrot.lane.b32.xlu0 %v2339, 32
    %v2342 = vpop.permute.xlu0 %2341
    %v2344 = vadd.f32 %v2334, %v2342
    %v2345 = vtanh.pop %v2344
    %2347 = vrot.lane.b32.xlu0 %v2345, 32
    %v2348 = vpop.permute.xlu0 %2347
    %v2350 = vmul.f32 %v2332, %v2348
    %v2351 = vld [vmem:[%s7] sm:$0xff]
    %v2352 = vld [vmem:[%s7 + $0x8] sm:$0xff]
    %v2353 = vld [vmem:[%s7 + $0x10] sm:$0xff]
    %v2354 = vld [vmem:[%s7 + $0x18] sm:$0xff]
    %v2355 = vld [vmem:[#allocation4] sm:$0x1]
    %v2357 = vlaneseq
    %v2358 = vshrl.u32 %v2357, 7
    %v2359 = vsub.s32 0, %v2358
    %v2360 = vrot.slane %v2355, %v2359
    %2363 = vrot.lane.b32.xlu0 %v2350, 64
    %v2364 = vpop.permute.xlu0 %2363
    %v2365 = vsel %vm224, %v2364, 0
    %2367 = vmatprep.subr.mxu0 0.0
    %2368 = vmatpush1.msra.mxu0 %v2351
    %2369 = vmatprep.subr.mxu0 0.0
    %2370 = vmatpush1.msra.mxu0 %v2352
    %2371 = vmatprep.subr.mxu0 0.0
    %2372 = vmatpush1.msra.mxu0 %v2353
    %2373 = vmatprep.subr.mxu0 0.0
    %2374 = vmatpush1.msra.mxu0 %v2354
    %2375 = vmatprep.subr.mxu0 0.0
    %2376 = vmatpush1.msra.mxu0 0.0
    %2377 = vmatprep.subr.mxu0 0.0
    %2378 = vmatpush1.msra.mxu0 0.0
    %2379 = vmatprep.subr.mxu0 0.0
    %2380 = vmatpush1.msra.mxu0 0.0
    %2381 = vmatprep.subr.mxu0 0.0
    %2382 = vmatpush1.msra.mxu0 0.0
    %2383 = vmatprep.subr.mxu0 0.0
    %2384 = vmatpush1.msra.mxu0 0.0
    %2385 = vmatprep.subr.mxu0 0.0
    %2386 = vmatpush1.msra.mxu0 0.0
    %2387 = vmatprep.subr.mxu0 0.0
    %2388 = vmatpush1.msra.mxu0 0.0
    %2389 = vmatprep.subr.mxu0 0.0
    %2390 = vmatpush1.msra.mxu0 0.0
    %2391 = vmatprep.subr.mxu0 0.0
    %2392 = vmatpush1.msra.mxu0 0.0
    %2393 = vmatprep.subr.mxu0 0.0
    %2394 = vmatpush1.msra.mxu0 0.0
    %2395 = vmatprep.subr.mxu0 0.0
    %2396 = vmatpush1.msra.mxu0 0.0
    %2397 = vmatprep.subr.mxu0 0.0
    %2398 = vmatpush1.msra.mxu0 0.0
    %2399 = vmatprep.subr.mxu0 0.0
    %2400 = vmatpush1.msra.mxu0 0.0
    %2401 = vmatprep.subr.mxu0 0.0
    %2402 = vmatpush1.msra.mxu0 0.0
    %2403 = vmatprep.subr.mxu0 0.0
    %2404 = vmatpush1.msra.mxu0 0.0
    %2405 = vmatprep.subr.mxu0 0.0
    %2406 = vmatpush1.msra.mxu0 0.0
    %2407 = vmatprep.subr.mxu0 0.0
    %2408 = vmatpush1.msra.mxu0 0.0
    %2409 = vmatprep.subr.mxu0 0.0
    %2410 = vmatpush1.msra.mxu0 0.0
    %2411 = vmatprep.subr.mxu0 0.0
    %2412 = vmatpush1.msra.mxu0 0.0
    %2413 = vmatprep.subr.mxu0 0.0
    %2414 = vmatpush1.msra.mxu0 0.0
    %2415 = vmatprep.subr.mxu0 0.0
    %2416 = vmatpush1.msra.mxu0 0.0
    %2417 = vmatprep.subr.mxu0 0.0
    %2418 = vmatpush1.msra.mxu0 0.0
    %2419 = vmatprep.subr.mxu0 0.0
    %2420 = vmatpush1.msra.mxu0 0.0
    %2421 = vmatprep.subr.mxu0 0.0
    %2422 = vmatpush1.msra.mxu0 0.0
    %2423 = vmatprep.subr.mxu0 0.0
    %2424 = vmatpush1.msra.mxu0 0.0
    %2425 = vmatprep.subr.mxu0 0.0
    %2426 = vmatpush1.msra.mxu0 0.0
    %2427 = vmatprep.subr.mxu0 0.0
    %2428 = vmatpush1.msra.mxu0 0.0
    %2429 = vmatprep.subr.mxu0 0.0
    %2430 = vmatpush1.msra.mxu0 0.0
    %2431 = vmatprep.mubr.f32.mxu0 0.0
    %2432 = vmatmul.mubr.f32.gmra.mrb[0].mxu0 %v2365
    %v2433 = vpop.f32.mrb[0].mxu0
    %v2434 = vadd.f32 %v2360, %v2433
    %v2435 = vpop.f32.mrb[0].mxu0
    %2436 = vdwg.mxu0
    %2437 = vst [vmem:[%s9] sm:$0xff] %v2434
    // Predicated region
    $region46: #{name_classifier_forward.1} parent=1 // pred_check
      _
    $region47: #{name_classifier_forward.1} parent=1 // pred_check_branch
      %2439 = sbr.rel (0) target = $region49
    $region48: #{name_classifier_forward.1} parent=1 // pred_region
      _
    $region49: #{name_classifier_forward.1} parent=1 // pred_fallthru
      _
    // Predicated region
    $region50: #{name_classifier_forward.1} parent=1 // pred_check
      _
    $region51: #{name_classifier_forward.1} parent=1 // pred_check_branch
      %2441 = sbr.rel (0) target = $region53
    $region52: #{name_classifier_forward.1} parent=1 // pred_region
      _
    $region53: #{name_classifier_forward.1} parent=1 // pred_fallthru
      _
    %2442 = vsyncpa [#allocation3], 1
    %2443 = vsyncpa [#allocation5], 1

</llo_original>
